<compile_context>
chip_gen: v6e
topology: v6e:2x2x1
jax: 0.10.0
libtpu: 0.0.40
codegen_flags: <defaults>
</compile_context>

<pallas_src>
import math
from functools import partial

import jax
import jax.numpy as jnp
from jax.experimental import pallas as pl
from jax.experimental.pallas import tpu as pltpu


# ----------------------------------------------------------------------------
# Chip-gated tiling defaults (v5e/v6e: 128 MiB VMEM -> big tiles; v7x: 64 MiB)
# ----------------------------------------------------------------------------

def _chip_defaults():
    try:
        info = pltpu.get_tpu_info()
        vmem = int(getattr(info, "vmem_capacity_bytes", 0) or 0)
    except Exception:
        vmem = 0
    if vmem >= 100 * 1024 * 1024:            # v5e / v6e (128 MiB VMEM)
        return 1024, 96 * 1024 * 1024
    return 512, 40 * 1024 * 1024             # v7x (64 MiB) or unknown: conservative


_BLOCK_M, _VMEM_LIMIT = _chip_defaults()
_BLOCK_N = 512        # cout tile for the GEMM path (lane-dense, >=128)
_BLOCK_N_DIRECT = 256  # cout tile for the direct 3x3 conv path
_K_TILE_MAX = 2048    # every conv here has K <= 2048 -> weights VMEM-resident


def _round_up(x, m):
    return ((x + m - 1) // m) * m


def _pick_k_tile(K):
    """Single K step (weight resident for the whole GEMM) when K <= _K_TILE_MAX."""
    if K <= _K_TILE_MAX:
        return K
    t = (_K_TILE_MAX // 128) * 128
    while t >= 128:
        if K % t == 0:
            return t
        t -= 128
    return K


# ----------------------------------------------------------------------------
# Pallas kernels
# ----------------------------------------------------------------------------

def _gemm_bn_act_kernel(x_ref, w_ref, s_ref, b_ref, *rest, apply_relu, has_residual):
    """K-tiled GEMM + f32 accumulator + folded-BN (+residual) (+ReLU) epilogue."""
    if has_residual:
        r_ref, o_ref, acc_ref = rest
    else:
        o_ref, acc_ref = rest

    k = pl.program_id(2)

    @pl.when(k == 0)
    def _():
        acc_ref[...] = jnp.zeros_like(acc_ref)

    acc_ref[...] += jnp.dot(x_ref[...], w_ref[...],
                            preferred_element_type=jnp.float32)

    @pl.when(k == pl.num_programs(2) - 1)
    def _():
        y = acc_ref[...] * s_ref[...] + b_ref[...]            # f32 epilogue
        if has_residual:
            y = y + rest[0][...].astype(jnp.float32)
        if apply_relu:
            y = jnp.maximum(y, 0.0)
        o_ref[...] = y.astype(o_ref.dtype)


def _direct_conv_kernel(*refs, taps, cin, n_phase, apply_relu):
    """3x3 conv as 9 shifted-window MXU matmuls over a flat per-image canvas.

    refs = (phase_0..phase_{n_phase-1}, w, scale, bias, out)
      phase_i : (1, Lx, cin)       bf16 flat padded activation (or s2 phase)
      w       : (9*cin, tn)        bf16 stacked per-tap weights
      out     : (1, Mout, tn)      bf16 canvas output (junk cols sliced in glue)
    taps: static tuple of (phase_index, flat_row_offset) per kernel tap.
    """
    x_refs = refs[:n_phase]
    w_ref, s_ref, b_ref, o_ref = refs[n_phase:]
    _, mout, _tn = o_ref.shape

    acc = None
    for t, (p, off) in enumerate(taps):
        xwin = x_refs[p][0, pl.ds(off, mout), :]              # (Mout, cin) bf16
        wt = w_ref[pl.ds(t * cin, cin), :]                    # (cin, tn)  bf16
        d = jnp.dot(xwin, wt, preferred_element_type=jnp.float32)
        acc = d if acc is None else acc + d

    y = acc * s_ref[...] + b_ref[...]
    if apply_relu:
        y = jnp.maximum(y, 0.0)
    o_ref[0] = y.astype(o_ref.dtype)


def _maxpool_direct_kernel(*refs, taps):
    """3x3/stride-2 max pool: elementwise max of 9 shifted phase windows."""
    x_refs = refs[:4]
    o_ref = refs[4]
    _, mout, _c = o_ref.shape
    m = None
    for (p, off) in taps:
        v = x_refs[p][0, pl.ds(off, mout), :]
        m = v if m is None else jnp.maximum(m, v)
    o_ref[0] = m.astype(o_ref.dtype)


def _avgpool_kernel(x_ref, o_ref):
    # x_ref: (1, H*W, C) -> (1, 1, C) global average pool (f32 math).
    o_ref[...] = jnp.mean(x_ref[...].astype(jnp.float32), axis=1, keepdims=True)


# ----------------------------------------------------------------------------
# Pallas wrappers
# ----------------------------------------------------------------------------

def _pallas_gemm_bn_act(x, w, scale2, bias2, relu, residual=None):
    """x: (M, K) bf16, w: (K, N) bf16, scale2/bias2: (1, N) f32 -> (M, N) bf16.

    Grid (Mb, Nb, Kb) with K innermost ('arbitrary'); M and N 'parallel'
    (keeps both v7x TensorCores fed even when M collapses in late layers).
    Ragged last M block: stale accumulator tail rows are never stored
    (masked writeback) and nothing reduces across M in-kernel.
    """
    M, K = x.shape
    _, N = w.shape
    bm = min(_BLOCK_M, _round_up(M, 16))        # bf16 sublane tile is (16, 128)
    tn = min(_BLOCK_N, N)
    kt = _pick_k_tile(K)
    grid = (pl.cdiv(M, bm), N // tn, K // kt)

    in_specs = [
        pl.BlockSpec((bm, kt), lambda i, j, k: (i, k)),       # activations
        pl.BlockSpec((kt, tn), lambda i, j, k: (k, j)),       # weights
        pl.BlockSpec((1, tn), lambda i, j, k: (0, j)),        # bn scale
        pl.BlockSpec((1, tn), lambda i, j, k: (0, j)),        # bn bias
    ]
    args = [x, w, scale2, bias2]
    if residual is not None:
        in_specs.append(pl.BlockSpec((bm, tn), lambda i, j, k: (i, j)))
        args.append(residual)

    kernel = partial(_gemm_bn_act_kernel, apply_relu=relu,
                     has_residual=residual is not None)

    return pl.pallas_call(
        kernel,
        out_shape=jax.ShapeDtypeStruct((M, N), jnp.bfloat16),
        grid=grid,
        in_specs=in_specs,
        out_specs=pl.BlockSpec((bm, tn), lambda i, j, k: (i, j)),
        scratch_shapes=[pltpu.VMEM((bm, tn), jnp.float32)],
        compiler_params=pltpu.CompilerParams(
            dimension_semantics=("parallel", "parallel", "arbitrary"),
            vmem_limit_bytes=_VMEM_LIMIT,
        ),
    )(*args)


def _direct_conv3x3(x, wmat, scale2, bias2, *, stride, relu):
    """3x3 conv (pad=1) + folded BN + optional ReLU without im2col patches."""
    N, H, W, C = x.shape
    cout = wmat.shape[1]
    xp = jnp.pad(x, ((0, 0), (1, 1), (1, 1), (0, 0)))         # zero pad (conv)

    if stride == 1:
        Ho, Wo = H, W
        Wc = W + 2                                            # canvas width = Wp
        planes = [xp.reshape(N, (H + 2) * (W + 2), C)]
        taps = tuple((0, dy * Wc + dx) for dy in range(3) for dx in range(3))
    else:  # stride == 2 (even H/W): 2x2 space-to-depth keeps all taps contiguous
        Ho, Wo = H // 2, W // 2
        Wc = Wo + 1
        planes = [xp[:, py::2, px::2, :].reshape(N, (Ho + 1) * (Wo + 1), C)
                  for py in (0, 1) for px in (0, 1)]
        taps = tuple(((dy % 2) * 2 + (dx % 2), (dy // 2) * Wc + (dx // 2))
                     for dy in range(3) for dx in range(3))

    # Guard rows so every tap window stays in-bounds (affects junk outputs only).
    planes = [jnp.pad(p, ((0, 0), (0, 8), (0, 0))) for p in planes]
    Lx = planes[0].shape[1]
    n_phase = len(planes)
    Mout = Ho * Wc                       # canvas rows; cols >= Wo are junk
    tn = min(_BLOCK_N_DIRECT, cout)
    ncb = cout // tn

    kernel = partial(_direct_conv_kernel, taps=taps, cin=C,
                     n_phase=n_phase, apply_relu=relu)
    x_spec = pl.BlockSpec((1, Lx, C), lambda j, n: (n, 0, 0))
    in_specs = ([x_spec] * n_phase +
                [pl.BlockSpec((9 * C, tn), lambda j, n: (0, j)),
                 pl.BlockSpec((1, tn), lambda j, n: (0, j)),
                 pl.BlockSpec((1, tn), lambda j, n: (0, j))])

    out_flat = pl.pallas_call(
        kernel,
        out_shape=jax.ShapeDtypeStruct((N, Mout, cout), jnp.bfloat16),
        grid=(ncb, N),                   # batch fastest: weights fetched ncb times
        in_specs=in_specs,
        out_specs=pl.BlockSpec((1, Mout, tn), lambda j, n: (n, 0, j)),
        compiler_params=pltpu.CompilerParams(
            dimension_semantics=("parallel", "parallel"),
            vmem_limit_bytes=_VMEM_LIMIT,
        ),
    )(*planes, wmat, scale2, bias2)

    return out_flat.reshape(N, Ho, Wc, cout)[:, :, :Wo, :]


# ----------------------------------------------------------------------------
# Conv / pool building blocks
# ----------------------------------------------------------------------------

def _im2col(x, kh, kw, stride, pad):
    """Used only for 1x1 convs (cheap) and the 7x7 stem."""
    N, H, W, C = x.shape
    if kh == 1 and kw == 1 and pad == 0:
        Ho, Wo = (H - 1) // stride + 1, (W - 1) // stride + 1
        patches = x[:, ::stride, ::stride, :].reshape(N * Ho * Wo, C)
        return patches, (N, Ho, Wo)
    xp = jnp.pad(x, ((0, 0), (pad, pad), (pad, pad), (0, 0)))
    Hp, Wp = H + 2 * pad, W + 2 * pad
    Ho = (Hp - kh) // stride + 1
    Wo = (Wp - kw) // stride + 1
    cols = []
    for i in range(kh):
        for j in range(kw):
            cols.append(xp[:, i:i + stride * Ho:stride, j:j + stride * Wo:stride, :])
    patches = jnp.concatenate(cols, axis=-1)
    return patches.reshape(N * Ho * Wo, kh * kw * C), (N, Ho, Wo)


@partial(jax.jit, static_argnames=("kh", "kw", "stride", "pad", "relu"))
def conv_bn_act(x_nhwc, wmat, scale2, bias2, residual, *, kh, kw, stride, pad, relu):
    """Conv2d(no bias) + folded BN + optional fused residual add + optional ReLU."""
    N, H, W, _ = x_nhwc.shape
    direct_ok = (kh == 3 and kw == 3 and pad == 1 and residual is None and
                 (stride == 1 or (stride == 2 and H % 2 == 0 and W % 2 == 0)))
    if direct_ok:
        return _direct_conv3x3(x_nhwc, wmat, scale2, bias2, stride=stride, relu=relu)

    patches, (N, Ho, Wo) = _im2col(x_nhwc, kh, kw, stride, pad)
    Kw = wmat.shape[0]
    if patches.shape[1] < Kw:            # stem: contraction zero-padded 147 -> 256
        patches = jnp.pad(patches, ((0, 0), (0, Kw - patches.shape[1])))
    cout = wmat.shape[1]
    r = None if residual is None else residual.reshape(N * Ho * Wo, cout)
    y = _pallas_gemm_bn_act(patches, wmat, scale2, bias2, relu, r)
    return y.reshape(N, Ho, Wo, cout)


@partial(jax.jit, static_argnames=("k", "stride", "pad"))
def maxpool2d(x_nhwc, *, k=3, stride=2, pad=1):
    assert k == 3 and stride == 2 and pad == 1
    N, H, W, C = x_nhwc.shape
    Ho, Wo = H // 2, W // 2
    Wc = Wo + 1
    xp = jnp.pad(x_nhwc, ((0, 0), (pad, pad), (pad, pad), (0, 0)),
                 constant_values=-jnp.inf)
    planes = [xp[:, py::2, px::2, :].reshape(N, (Ho + 1) * (Wo + 1), C)
              for py in (0, 1) for px in (0, 1)]
    planes = [jnp.pad(p, ((0, 0), (0, 8), (0, 0)), constant_values=-jnp.inf)
              for p in planes]
    Lx = planes[0].shape[1]
    taps = tuple(((dy % 2) * 2 + (dx % 2), (dy // 2) * Wc + (dx // 2))
                 for dy in range(3) for dx in range(3))
    Mout = Ho * Wc

    out_flat = pl.pallas_call(
        partial(_maxpool_direct_kernel, taps=taps),
        out_shape=jax.ShapeDtypeStruct((N, Mout, C), x_nhwc.dtype),
        grid=(N,),
        in_specs=[pl.BlockSpec((1, Lx, C), lambda n: (n, 0, 0))] * 4,
        out_specs=pl.BlockSpec((1, Mout, C), lambda n: (n, 0, 0)),
        compiler_params=pltpu.CompilerParams(
            dimension_semantics=("parallel",),
            vmem_limit_bytes=_VMEM_LIMIT,
        ),
    )(*planes)
    return out_flat.reshape(N, Ho, Wc, C)[:, :, :Wo, :]


@jax.jit
def global_avgpool(x_nhwc):
    N, H, W, C = x_nhwc.shape
    xr = x_nhwc.reshape(N, H * W, C)
    out = pl.pallas_call(
        _avgpool_kernel,
        out_shape=jax.ShapeDtypeStruct((N, 1, C), jnp.float32),
        grid=(N,),
        in_specs=[pl.BlockSpec((1, H * W, C), lambda i: (i, 0, 0))],
        out_specs=pl.BlockSpec((1, 1, C), lambda i: (i, 0, 0)),
        compiler_params=pltpu.CompilerParams(
            dimension_semantics=("parallel",),
        ),
    )(xr)
    return out.reshape(N, C)


# ----------------------------------------------------------------------------
# ResNet-50 structure (torchvision) with synthetic deterministic params.
# OIHW conv weight -> (kh*kw*cin, cout) bf16 GEMM matrix (tap-major rows, so
# the same matrix feeds both the GEMM path and the direct-conv kernel);
# BatchNorm folded to (1, cout) f32 scale/bias.
# ----------------------------------------------------------------------------

LAYER_CFG = [(64, 3, 1), (128, 4, 2), (256, 6, 2), (512, 3, 2)]  # (planes, blocks, stride)
EXPANSION = 4


def _make_conv_bn(kconv, kbn, cin, cout, ksize, eps=1e-5, pad_k_to=None):
    fan_in = cin * ksize * ksize
    w = jax.random.normal(kconv, (cout, cin, ksize, ksize), jnp.float32) / math.sqrt(fan_in)
    wmat = jnp.transpose(w, (2, 3, 1, 0)).reshape(ksize * ksize * cin, cout)
    if pad_k_to is not None and wmat.shape[0] < pad_k_to:
        wmat = jnp.pad(wmat, ((0, pad_k_to - wmat.shape[0]), (0, 0)))
    wmat = wmat.astype(jnp.bfloat16)
    k1, k2, k3, k4 = jax.random.split(kbn, 4)
    gamma = 1.0 + 0.1 * jax.random.normal(k1, (cout,), jnp.float32)
    beta = 0.05 * jax.random.normal(k2, (cout,), jnp.float32)
    mean = 0.05 * jax.random.normal(k3, (cout,), jnp.float32)
    var = 0.5 + 0.5 * jax.nn.sigmoid(jax.random.normal(k4, (cout,), jnp.float32))
    scale = gamma / jnp.sqrt(var + eps)
    bias = beta - mean * scale
    return wmat, scale.reshape(1, cout), bias.reshape(1, cout)


def init_resnet50_params(key):
    keys = iter(jax.random.split(key, 512))
    nk = lambda: next(keys)
    params = {"stem": _make_conv_bn(nk(), nk(), 3, 64, 7, pad_k_to=256)}

    inplanes = 64
    layers, strides = [], []
    for planes, nblocks, stride0 in LAYER_CFG:
        blocks, bstrides = [], []
        for b in range(nblocks):
            s = stride0 if b == 0 else 1
            blk = {
                "c1": _make_conv_bn(nk(), nk(), inplanes, planes, 1),
                "c2": _make_conv_bn(nk(), nk(), planes, planes, 3),
                "c3": _make_conv_bn(nk(), nk(), planes, planes * EXPANSION, 1),
            }
            if s != 1 or inplanes != planes * EXPANSION:
                blk["cd"] = _make_conv_bn(nk(), nk(), inplanes, planes * EXPANSION, 1)
            inplanes = planes * EXPANSION
            blocks.append(blk)
            bstrides.append(s)
        layers.append(blocks)
        strides.append(bstrides)
    params["layers"] = layers
    return params, strides


def bottleneck(x, blk, stride):
    out = conv_bn_act(x, *blk["c1"], None, kh=1, kw=1, stride=1, pad=0, relu=True)
    out = conv_bn_act(out, *blk["c2"], None, kh=3, kw=3, stride=stride, pad=1, relu=True)
    if "cd" in blk:
        identity = conv_bn_act(x, *blk["cd"], None,
                               kh=1, kw=1, stride=stride, pad=0, relu=False)
    else:
        identity = x
    # conv3 + BN + residual add + ReLU fused in a single Pallas GEMM epilogue.
    out = conv_bn_act(out, *blk["c3"], identity, kh=1, kw=1, stride=1, pad=0, relu=True)
    return out


def image_encoder_forward(params, strides, x_nchw):
    """Equivalent of ImageEncoder.forward: resnet50 backbone, fc=Identity."""
    x = jnp.transpose(x_nchw, (0, 2, 3, 1)).astype(jnp.bfloat16)   # NCHW -> NHWC bf16
    x = conv_bn_act(x, *params["stem"], None, kh=7, kw=7, stride=2, pad=3, relu=True)
    x = maxpool2d(x, k=3, stride=2, pad=1)
    for blocks, bstrides in zip(params["layers"], strides):
        for blk, s in zip(blocks, bstrides):
            x = bottleneck(x, blk, s)
    feats = global_avgpool(x)                                      # (N, 2048) f32
    return feats                                                   # fc = Identity


# ----------------------------------------------------------------------------
# main
# ----------------------------------------------------------------------------

if __name__ == "__main__":
    root = jax.random.PRNGKey(0)
    pkey, xkey = jax.random.split(root)

    params, strides = init_resnet50_params(pkey)

    # Small but architecture-consistent input: batch=2, 3 channels (fixed by
    # resnet50 conv1), 32x32 spatial (NCHW, like the PyTorch module).
    x = jax.random.normal(xkey, (2, 3, 32, 32), jnp.float32)

    feats = image_encoder_forward(params, strides, x)
    feats = jax.block_until_ready(feats)

    assert feats.shape == (2, 2048), feats.shape
    assert feats.dtype == jnp.float32
    assert bool(jnp.all(jnp.isfinite(feats)))
    print("KERNEL_OK")
</pallas_src>

<mosaic_0001>
module attributes {stable_mosaic.version = 11 : i64} {
  func.func @_gemm_bn_act_kernel(%arg0: i32, %arg1: i32, %arg2: i32, %arg3: memref<512x256xbf16, #tpu.memory_space<vmem>>, %arg4: memref<256x64xbf16, #tpu.memory_space<vmem>>, %arg5: memref<1x64xf32, #tpu.memory_space<vmem>>, %arg6: memref<1x64xf32, #tpu.memory_space<vmem>>, %arg7: memref<512x64xbf16, #tpu.memory_space<vmem>>, %arg8: memref<512x64xf32, #tpu.memory_space<vmem>>) attributes {dimension_semantics = [#tpu.dimension_semantics<parallel>, #tpu.dimension_semantics<parallel>, #tpu.dimension_semantics<arbitrary>], iteration_bounds = array<i64: 1, 1, 1>, scalar_prefetch = 0 : i64, scratch_operands = 1 : i64, tpu.core_type = #tpu.core_type<tc>, window_params = [{transform_indices = @transform_0, window_bounds = array<i64: 512, 256>}, {transform_indices = @transform_1, window_bounds = array<i64: 256, 64>}, {transform_indices = @transform_2, window_bounds = array<i64: 1, 64>}, {transform_indices = @transform_3, window_bounds = array<i64: 1, 64>}, {transform_indices = @transform_4, window_bounds = array<i64: 512, 64>}]} {
    %c0_i32 = arith.constant 0 : i32
    %0 = arith.cmpi eq, %arg2, %c0_i32 : i32
    %1 = arith.extui %0 : i1 to i32
    %c0_i32_0 = arith.constant 0 : i32
    %2 = arith.cmpi ne, %1, %c0_i32_0 : i32
    scf.if %2 {
      %cst_10 = arith.constant 0.000000e+00 : f32
      %12 = vector.broadcast %cst_10 : f32 to vector<512x64xf32>
      %c0_11 = arith.constant 0 : index
      %c0_12 = arith.constant 0 : index
      %13 = vector.load %arg8[%c0_11, %c0_12] : memref<512x64xf32, #tpu.memory_space<vmem>>, vector<512x64xf32>
      tpu.vector_store %arg8[%c0_11, %c0_12], %12 {strides = array<i32>} : memref<512x64xf32, #tpu.memory_space<vmem>>, vector<512x64xf32>,
    } else {
    }
    %c0 = arith.constant 0 : index
    %c0_1 = arith.constant 0 : index
    %3 = vector.load %arg8[%c0, %c0_1] : memref<512x64xf32, #tpu.memory_space<vmem>>, vector<512x64xf32>
    %c0_2 = arith.constant 0 : index
    %c0_3 = arith.constant 0 : index
    %4 = vector.load %arg3[%c0_2, %c0_3] : memref<512x256xbf16, #tpu.memory_space<vmem>>, vector<512x256xbf16>
    %c0_4 = arith.constant 0 : index
    %c0_5 = arith.constant 0 : index
    %5 = vector.load %arg4[%c0_4, %c0_5] : memref<256x64xbf16, #tpu.memory_space<vmem>>, vector<256x64xbf16>
    %cst = arith.constant dense<0.000000e+00> : vector<512x64xf32>
    %6 = tpu.matmul %4, %5, %cst {dimension_numbers = #tpu.dot_dimension_numbers<[1], [0], [0], [1], [0, 0, 1, 1], [], []>} : vector<512x256xbf16>, vector<256x64xbf16>, vector<512x64xf32> -> vector<512x64xf32>
    %7 = arith.addf %3, %6 : vector<512x64xf32>
    %c0_6 = arith.constant 0 : index
    %c0_7 = arith.constant 0 : index
    %8 = vector.load %arg8[%c0_6, %c0_7] : memref<512x64xf32, #tpu.memory_space<vmem>>, vector<512x64xf32>
    tpu.vector_store %arg8[%c0_6, %c0_7], %7 {strides = array<i32>} : memref<512x64xf32, #tpu.memory_space<vmem>>, vector<512x64xf32>,
    %c0_i32_8 = arith.constant 0 : i32
    %9 = arith.cmpi eq, %arg2, %c0_i32_8 : i32
    %10 = arith.extui %9 : i1 to i32
    %c0_i32_9 = arith.constant 0 : i32
    %11 = arith.cmpi ne, %10, %c0_i32_9 : i32
    scf.if %11 {
      %c0_10 = arith.constant 0 : index
      %c0_11 = arith.constant 0 : index
      %12 = vector.load %arg8[%c0_10, %c0_11] : memref<512x64xf32, #tpu.memory_space<vmem>>, vector<512x64xf32>
      %c0_12 = arith.constant 0 : index
      %c0_13 = arith.constant 0 : index
      %13 = vector.load %arg5[%c0_12, %c0_13] : memref<1x64xf32, #tpu.memory_space<vmem>>, vector<1x64xf32>
      %14 = vector.broadcast %13 : vector<1x64xf32> to vector<512x64xf32>
      %15 = arith.mulf %12, %14 : vector<512x64xf32>
      %c0_14 = arith.constant 0 : index
      %c0_15 = arith.constant 0 : index
      %16 = vector.load %arg6[%c0_14, %c0_15] : memref<1x64xf32, #tpu.memory_space<vmem>>, vector<1x64xf32>
      %17 = vector.broadcast %16 : vector<1x64xf32> to vector<512x64xf32>
      %18 = arith.addf %15, %17 : vector<512x64xf32>
      %cst_16 = arith.constant 0.000000e+00 : f32
      %19 = vector.broadcast %cst_16 : f32 to vector<512x64xf32>
      %20 = arith.maximumf %18, %19 : vector<512x64xf32>
      %21 = arith.truncf %20 : vector<512x64xf32> to vector<512x64xbf16>
      %c0_17 = arith.constant 0 : index
      %c0_18 = arith.constant 0 : index
      %22 = vector.load %arg7[%c0_17, %c0_18] : memref<512x64xbf16, #tpu.memory_space<vmem>>, vector<512x64xbf16>
      tpu.vector_store %arg7[%c0_17, %c0_18], %21 {strides = array<i32>} : memref<512x64xbf16, #tpu.memory_space<vmem>>, vector<512x64xbf16>,
    } else {
    }
    return
  }
  func.func @transform_0(%arg0: i32, %arg1: i32, %arg2: i32) -> (i32, i32) {
    %c0_i32 = arith.constant 0 : i32
    return %arg0, %arg2 : i32, i32
  }
  func.func @transform_1(%arg0: i32, %arg1: i32, %arg2: i32) -> (i32, i32) {
    %c0_i32 = arith.constant 0 : i32
    return %arg2, %arg1 : i32, i32
  }
  func.func @transform_2(%arg0: i32, %arg1: i32, %arg2: i32) -> (i32, i32) {
    %c0_i32 = arith.constant 0 : i32
    %c0_i32_0 = arith.constant 0 : i32
    return %c0_i32, %arg1 : i32, i32
  }
  func.func @transform_3(%arg0: i32, %arg1: i32, %arg2: i32) -> (i32, i32) {
    %c0_i32 = arith.constant 0 : i32
    %c0_i32_0 = arith.constant 0 : i32
    return %c0_i32, %arg1 : i32, i32
  }
  func.func @transform_4(%arg0: i32, %arg1: i32, %arg2: i32) -> (i32, i32) {
    %c0_i32 = arith.constant 0 : i32
    return %arg0, %arg1 : i32, i32
  }
}

</mosaic_0001>

<llo_original>
// kernel: conv_bn_act.1
$region0: #{conv_bn_act.1}
  #allocation0 [shape = 'u32[]', space=smem, size = 0x4, offset = 0x4, fixed_abs, tag = 'smem constant byte address 0x4 - core index']
  #allocation1 [shape = 'u32[144,128]{1,0:T(1,128)}', space=vmem, size = 0x12000, scoped, tag = 'internal scratch']
  #allocation2 [shape = 'f32[512,64]{1,0:T(8,128)}', space=vmem, size = 0x40000, scoped, tag = 'scratch operand']
  %s0 = inlined_call_operand.vmem [shape: bf16[512,256], index: 0, kind: input, shape index: {}]
  %s1 = inlined_call_operand.vmem [shape: bf16[256,64], index: 1, kind: input, shape index: {}]
  %s2 = inlined_call_operand.vmem [shape: f32[1,64], index: 2, kind: input, shape index: {}]
  %s3 = inlined_call_operand.vmem [shape: f32[1,64], index: 3, kind: input, shape index: {}]
  %s4 = inlined_call_operand.hbm [shape: bf16[512,64], index: 4, kind: output, shape index: {}]
  %s5 = sld [smem:[#allocation0]]
  $region34: #{conv_bn_act.1} parent=0
    _
  %s7 = ssub.s32 1, %s5
  %s8 = scalar_select 0, %s7, %s5
  $region1: #{conv_bn_act.1} parent=0
    #allocation3 [shape = 'u8[131072]{0}', space=vmem, size = 0x20000, scoped, tag = 'output window, operand 0, single buffered']
    #allocation4 [shape = 's32[1]{0}', space=sflag, size = 0x4, scoped, tag = 'scoped memory for conv_bn_act.1']
    %9 = vsyncpa [#allocation4], 0
    // Predicated region
    $region2: #{conv_bn_act.1} parent=1 // pred_check
      _
    $region3: #{conv_bn_act.1} parent=1 // pred_check_branch
      %11 = sbr.rel (0) target = $region5
    $region4: #{conv_bn_act.1} parent=1 // pred_region
      _
    $region5: #{conv_bn_act.1} parent=1 // pred_fallthru
      _
    // Predicated region
    $region6: #{conv_bn_act.1} parent=1 // pred_check
      _
    $region7: #{conv_bn_act.1} parent=1 // pred_check_branch
      %13 = sbr.rel (0) target = $region9
    $region8: #{conv_bn_act.1} parent=1 // pred_region
      _
    $region9: #{conv_bn_act.1} parent=1 // pred_fallthru
      _
    // Predicated region
    $region10: #{conv_bn_act.1} parent=1 // pred_check
      _
    $region11: #{conv_bn_act.1} parent=1 // pred_check_branch
      %15 = sbr.rel (0) target = $region13
    $region12: #{conv_bn_act.1} parent=1 // pred_region
      _
    $region13: #{conv_bn_act.1} parent=1 // pred_fallthru
      _
    // Predicated region
    $region14: #{conv_bn_act.1} parent=1 // pred_check
      _
    $region15: #{conv_bn_act.1} parent=1 // pred_check_branch
      %17 = sbr.rel (0) target = $region17
    $region16: #{conv_bn_act.1} parent=1 // pred_region
      _
    $region17: #{conv_bn_act.1} parent=1 // pred_fallthru
      _
    %p19 = scmp.eq.s32.totalorder 0, 0
    // Predicated region
    $region18: #{conv_bn_act.1} parent=1 // pred_check
      %p20 = pneg %p19
    $region19: #{conv_bn_act.1} parent=1 // pred_check_branch
      %22 = sbr.rel (%p20) target = $region21
    $region20: #{conv_bn_act.1} parent=1 // pred_region
      %vm23 = vcmask 523264
      %24 = vst.msk [vmem:[#allocation2] sm:$0xff] %vm23, 0.0
      %25 = vst.msk [vmem:[#allocation2 + $0x8] sm:$0xff] %vm23, 0.0
      %26 = vst.msk [vmem:[#allocation2 + $0x10] sm:$0xff] %vm23, 0.0
      %27 = vst.msk [vmem:[#allocation2 + $0x18] sm:$0xff] %vm23, 0.0
      %28 = vst.msk [vmem:[#allocation2 + $0x20] sm:$0xff] %vm23, 0.0
      %29 = vst.msk [vmem:[#allocation2 + $0x28] sm:$0xff] %vm23, 0.0
      %30 = vst.msk [vmem:[#allocation2 + $0x30] sm:$0xff] %vm23, 0.0
      %31 = vst.msk [vmem:[#allocation2 + $0x38] sm:$0xff] %vm23, 0.0
      %32 = vst.msk [vmem:[#allocation2 + $0x40] sm:$0xff] %vm23, 0.0
      %33 = vst.msk [vmem:[#allocation2 + $0x48] sm:$0xff] %vm23, 0.0
      %34 = vst.msk [vmem:[#allocation2 + $0x50] sm:$0xff] %vm23, 0.0
      %35 = vst.msk [vmem:[#allocation2 + $0x58] sm:$0xff] %vm23, 0.0
      %36 = vst.msk [vmem:[#allocation2 + $0x60] sm:$0xff] %vm23, 0.0
      %37 = vst.msk [vmem:[#allocation2 + $0x68] sm:$0xff] %vm23, 0.0
      %38 = vst.msk [vmem:[#allocation2 + $0x70] sm:$0xff] %vm23, 0.0
      %39 = vst.msk [vmem:[#allocation2 + $0x78] sm:$0xff] %vm23, 0.0
      %40 = vst.msk [vmem:[#allocation2 + $0x80] sm:$0xff] %vm23, 0.0
      %41 = vst.msk [vmem:[#allocation2 + $0x88] sm:$0xff] %vm23, 0.0
      %42 = vst.msk [vmem:[#allocation2 + $0x90] sm:$0xff] %vm23, 0.0
      %43 = vst.msk [vmem:[#allocation2 + $0x98] sm:$0xff] %vm23, 0.0
      %44 = vst.msk [vmem:[#allocation2 + $0xa0] sm:$0xff] %vm23, 0.0
      %45 = vst.msk [vmem:[#allocation2 + $0xa8] sm:$0xff] %vm23, 0.0
      %46 = vst.msk [vmem:[#allocation2 + $0xb0] sm:$0xff] %vm23, 0.0
      %47 = vst.msk [vmem:[#allocation2 + $0xb8] sm:$0xff] %vm23, 0.0
      %48 = vst.msk [vmem:[#allocation2 + $0xc0] sm:$0xff] %vm23, 0.0
      %49 = vst.msk [vmem:[#allocation2 + $0xc8] sm:$0xff] %vm23, 0.0
      %50 = vst.msk [vmem:[#allocation2 + $0xd0] sm:$0xff] %vm23, 0.0
      %51 = vst.msk [vmem:[#allocation2 + $0xd8] sm:$0xff] %vm23, 0.0
      %52 = vst.msk [vmem:[#allocation2 + $0xe0] sm:$0xff] %vm23, 0.0
      %53 = vst.msk [vmem:[#allocation2 + $0xe8] sm:$0xff] %vm23, 0.0
      %54 = vst.msk [vmem:[#allocation2 + $0xf0] sm:$0xff] %vm23, 0.0
      %55 = vst.msk [vmem:[#allocation2 + $0xf8] sm:$0xff] %vm23, 0.0
      %56 = vst.msk [vmem:[#allocation2 + $0x100] sm:$0xff] %vm23, 0.0
      %57 = vst.msk [vmem:[#allocation2 + $0x108] sm:$0xff] %vm23, 0.0
      %58 = vst.msk [vmem:[#allocation2 + $0x110] sm:$0xff] %vm23, 0.0
      %59 = vst.msk [vmem:[#allocation2 + $0x118] sm:$0xff] %vm23, 0.0
      %60 = vst.msk [vmem:[#allocation2 + $0x120] sm:$0xff] %vm23, 0.0
      %61 = vst.msk [vmem:[#allocation2 + $0x128] sm:$0xff] %vm23, 0.0
      %62 = vst.msk [vmem:[#allocation2 + $0x130] sm:$0xff] %vm23, 0.0
      %63 = vst.msk [vmem:[#allocation2 + $0x138] sm:$0xff] %vm23, 0.0
      %64 = vst.msk [vmem:[#allocation2 + $0x140] sm:$0xff] %vm23, 0.0
      %65 = vst.msk [vmem:[#allocation2 + $0x148] sm:$0xff] %vm23, 0.0
      %66 = vst.msk [vmem:[#allocation2 + $0x150] sm:$0xff] %vm23, 0.0
      %67 = vst.msk [vmem:[#allocation2 + $0x158] sm:$0xff] %vm23, 0.0
      %68 = vst.msk [vmem:[#allocation2 + $0x160] sm:$0xff] %vm23, 0.0
      %69 = vst.msk [vmem:[#allocation2 + $0x168] sm:$0xff] %vm23, 0.0
      %70 = vst.msk [vmem:[#allocation2 + $0x170] sm:$0xff] %vm23, 0.0
      %71 = vst.msk [vmem:[#allocation2 + $0x178] sm:$0xff] %vm23, 0.0
      %72 = vst.msk [vmem:[#allocation2 + $0x180] sm:$0xff] %vm23, 0.0
      %73 = vst.msk [vmem:[#allocation2 + $0x188] sm:$0xff] %vm23, 0.0
      %74 = vst.msk [vmem:[#allocation2 + $0x190] sm:$0xff] %vm23, 0.0
      %75 = vst.msk [vmem:[#allocation2 + $0x198] sm:$0xff] %vm23, 0.0
      %76 = vst.msk [vmem:[#allocation2 + $0x1a0] sm:$0xff] %vm23, 0.0
      %77 = vst.msk [vmem:[#allocation2 + $0x1a8] sm:$0xff] %vm23, 0.0
      %78 = vst.msk [vmem:[#allocation2 + $0x1b0] sm:$0xff] %vm23, 0.0
      %79 = vst.msk [vmem:[#allocation2 + $0x1b8] sm:$0xff] %vm23, 0.0
      %80 = vst.msk [vmem:[#allocation2 + $0x1c0] sm:$0xff] %vm23, 0.0
      %81 = vst.msk [vmem:[#allocation2 + $0x1c8] sm:$0xff] %vm23, 0.0
      %82 = vst.msk [vmem:[#allocation2 + $0x1d0] sm:$0xff] %vm23, 0.0
      %83 = vst.msk [vmem:[#allocation2 + $0x1d8] sm:$0xff] %vm23, 0.0
      %84 = vst.msk [vmem:[#allocation2 + $0x1e0] sm:$0xff] %vm23, 0.0
      %85 = vst.msk [vmem:[#allocation2 + $0x1e8] sm:$0xff] %vm23, 0.0
      %86 = vst.msk [vmem:[#allocation2 + $0x1f0] sm:$0xff] %vm23, 0.0
      %87 = vst.msk [vmem:[#allocation2 + $0x1f8] sm:$0xff] %vm23, 0.0
    $region21: #{conv_bn_act.1} parent=1 // pred_fallthru
      _
    %v88 = vld [vmem:[#allocation2] sm:$0xff]
    %v89 = vld [vmem:[#allocation2 + $0x8] sm:$0xff]
    %v90 = vld [vmem:[#allocation2 + $0x10] sm:$0xff]
    %v91 = vld [vmem:[#allocation2 + $0x18] sm:$0xff]
    %v92 = vld [vmem:[#allocation2 + $0x20] sm:$0xff]
    %v93 = vld [vmem:[#allocation2 + $0x28] sm:$0xff]
    %v94 = vld [vmem:[#allocation2 + $0x30] sm:$0xff]
    %v95 = vld [vmem:[#allocation2 + $0x38] sm:$0xff]
    %v96 = vld [vmem:[#allocation2 + $0x40] sm:$0xff]
    %v97 = vld [vmem:[#allocation2 + $0x48] sm:$0xff]
    %v98 = vld [vmem:[#allocation2 + $0x50] sm:$0xff]
    %v99 = vld [vmem:[#allocation2 + $0x58] sm:$0xff]
    %v100 = vld [vmem:[#allocation2 + $0x60] sm:$0xff]
    %v101 = vld [vmem:[#allocation2 + $0x68] sm:$0xff]
    %v102 = vld [vmem:[#allocation2 + $0x70] sm:$0xff]
    %v103 = vld [vmem:[#allocation2 + $0x78] sm:$0xff]
    %v104 = vld [vmem:[#allocation2 + $0x80] sm:$0xff]
    %v105 = vld [vmem:[#allocation2 + $0x88] sm:$0xff]
    %v106 = vld [vmem:[#allocation2 + $0x90] sm:$0xff]
    %v107 = vld [vmem:[#allocation2 + $0x98] sm:$0xff]
    %v108 = vld [vmem:[#allocation2 + $0xa0] sm:$0xff]
    %v109 = vld [vmem:[#allocation2 + $0xa8] sm:$0xff]
    %v110 = vld [vmem:[#allocation2 + $0xb0] sm:$0xff]
    %v111 = vld [vmem:[#allocation2 + $0xb8] sm:$0xff]
    %v112 = vld [vmem:[#allocation2 + $0xc0] sm:$0xff]
    %v113 = vld [vmem:[#allocation2 + $0xc8] sm:$0xff]
    %v114 = vld [vmem:[#allocation2 + $0xd0] sm:$0xff]
    %v115 = vld [vmem:[#allocation2 + $0xd8] sm:$0xff]
    %v116 = vld [vmem:[#allocation2 + $0xe0] sm:$0xff]
    %v117 = vld [vmem:[#allocation2 + $0xe8] sm:$0xff]
    %v118 = vld [vmem:[#allocation2 + $0xf0] sm:$0xff]
    %v119 = vld [vmem:[#allocation2 + $0xf8] sm:$0xff]
    %v120 = vld [vmem:[#allocation2 + $0x100] sm:$0xff]
    %v121 = vld [vmem:[#allocation2 + $0x108] sm:$0xff]
    %v122 = vld [vmem:[#allocation2 + $0x110] sm:$0xff]
    %v123 = vld [vmem:[#allocation2 + $0x118] sm:$0xff]
    %v124 = vld [vmem:[#allocation2 + $0x120] sm:$0xff]
    %v125 = vld [vmem:[#allocation2 + $0x128] sm:$0xff]
    %v126 = vld [vmem:[#allocation2 + $0x130] sm:$0xff]
    %v127 = vld [vmem:[#allocation2 + $0x138] sm:$0xff]
    %v128 = vld [vmem:[#allocation2 + $0x140] sm:$0xff]
    %v129 = vld [vmem:[#allocation2 + $0x148] sm:$0xff]
    %v130 = vld [vmem:[#allocation2 + $0x150] sm:$0xff]
    %v131 = vld [vmem:[#allocation2 + $0x158] sm:$0xff]
    %v132 = vld [vmem:[#allocation2 + $0x160] sm:$0xff]
    %v133 = vld [vmem:[#allocation2 + $0x168] sm:$0xff]
    %v134 = vld [vmem:[#allocation2 + $0x170] sm:$0xff]
    %v135 = vld [vmem:[#allocation2 + $0x178] sm:$0xff]
    %v136 = vld [vmem:[#allocation2 + $0x180] sm:$0xff]
    %v137 = vld [vmem:[#allocation2 + $0x188] sm:$0xff]
    %v138 = vld [vmem:[#allocation2 + $0x190] sm:$0xff]
    %v139 = vld [vmem:[#allocation2 + $0x198] sm:$0xff]
    %v140 = vld [vmem:[#allocation2 + $0x1a0] sm:$0xff]
    %v141 = vld [vmem:[#allocation2 + $0x1a8] sm:$0xff]
    %v142 = vld [vmem:[#allocation2 + $0x1b0] sm:$0xff]
    %v143 = vld [vmem:[#allocation2 + $0x1b8] sm:$0xff]
    %v144 = vld [vmem:[#allocation2 + $0x1c0] sm:$0xff]
    %v145 = vld [vmem:[#allocation2 + $0x1c8] sm:$0xff]
    %v146 = vld [vmem:[#allocation2 + $0x1d0] sm:$0xff]
    %v147 = vld [vmem:[#allocation2 + $0x1d8] sm:$0xff]
    %v148 = vld [vmem:[#allocation2 + $0x1e0] sm:$0xff]
    %v149 = vld [vmem:[#allocation2 + $0x1e8] sm:$0xff]
    %v150 = vld [vmem:[#allocation2 + $0x1f0] sm:$0xff]
    %v151 = vld [vmem:[#allocation2 + $0x1f8] sm:$0xff]
    %v152 = vld [vmem:[%s0] sm:$0xff]
    %v153 = vld [vmem:[%s0 + $0x8] sm:$0xff]
    %v154 = vld [vmem:[%s0 + $0x10] sm:$0xff]
    %v155 = vld [vmem:[%s0 + $0x18] sm:$0xff]
    %v156 = vld [vmem:[%s0 + $0x20] sm:$0xff]
    %v157 = vld [vmem:[%s0 + $0x28] sm:$0xff]
    %v158 = vld [vmem:[%s0 + $0x30] sm:$0xff]
    %v159 = vld [vmem:[%s0 + $0x38] sm:$0xff]
    %v160 = vld [vmem:[%s0 + $0x40] sm:$0xff]
    %v161 = vld [vmem:[%s0 + $0x48] sm:$0xff]
    %v162 = vld [vmem:[%s0 + $0x50] sm:$0xff]
    %v163 = vld [vmem:[%s0 + $0x58] sm:$0xff]
    %v164 = vld [vmem:[%s0 + $0x60] sm:$0xff]
    %v165 = vld [vmem:[%s0 + $0x68] sm:$0xff]
    %v166 = vld [vmem:[%s0 + $0x70] sm:$0xff]
    %v167 = vld [vmem:[%s0 + $0x78] sm:$0xff]
    %v168 = vld [vmem:[%s0 + $0x80] sm:$0xff]
    %v169 = vld [vmem:[%s0 + $0x88] sm:$0xff]
    %v170 = vld [vmem:[%s0 + $0x90] sm:$0xff]
    %v171 = vld [vmem:[%s0 + $0x98] sm:$0xff]
    %v172 = vld [vmem:[%s0 + $0xa0] sm:$0xff]
    %v173 = vld [vmem:[%s0 + $0xa8] sm:$0xff]
    %v174 = vld [vmem:[%s0 + $0xb0] sm:$0xff]
    %v175 = vld [vmem:[%s0 + $0xb8] sm:$0xff]
    %v176 = vld [vmem:[%s0 + $0xc0] sm:$0xff]
    %v177 = vld [vmem:[%s0 + $0xc8] sm:$0xff]
    %v178 = vld [vmem:[%s0 + $0xd0] sm:$0xff]
    %v179 = vld [vmem:[%s0 + $0xd8] sm:$0xff]
    %v180 = vld [vmem:[%s0 + $0xe0] sm:$0xff]
    %v181 = vld [vmem:[%s0 + $0xe8] sm:$0xff]
    %v182 = vld [vmem:[%s0 + $0xf0] sm:$0xff]
    %v183 = vld [vmem:[%s0 + $0xf8] sm:$0xff]
    %v184 = vld [vmem:[%s0 + $0x100] sm:$0xff]
    %v185 = vld [vmem:[%s0 + $0x108] sm:$0xff]
    %v186 = vld [vmem:[%s0 + $0x110] sm:$0xff]
    %v187 = vld [vmem:[%s0 + $0x118] sm:$0xff]
    %v188 = vld [vmem:[%s0 + $0x120] sm:$0xff]
    %v189 = vld [vmem:[%s0 + $0x128] sm:$0xff]
    %v190 = vld [vmem:[%s0 + $0x130] sm:$0xff]
    %v191 = vld [vmem:[%s0 + $0x138] sm:$0xff]
    %v192 = vld [vmem:[%s0 + $0x140] sm:$0xff]
    %v193 = vld [vmem:[%s0 + $0x148] sm:$0xff]
    %v194 = vld [vmem:[%s0 + $0x150] sm:$0xff]
    %v195 = vld [vmem:[%s0 + $0x158] sm:$0xff]
    %v196 = vld [vmem:[%s0 + $0x160] sm:$0xff]
    %v197 = vld [vmem:[%s0 + $0x168] sm:$0xff]
    %v198 = vld [vmem:[%s0 + $0x170] sm:$0xff]
    %v199 = vld [vmem:[%s0 + $0x178] sm:$0xff]
    %v200 = vld [vmem:[%s0 + $0x180] sm:$0xff]
    %v201 = vld [vmem:[%s0 + $0x188] sm:$0xff]
    %v202 = vld [vmem:[%s0 + $0x190] sm:$0xff]
    %v203 = vld [vmem:[%s0 + $0x198] sm:$0xff]
    %v204 = vld [vmem:[%s0 + $0x1a0] sm:$0xff]
    %v205 = vld [vmem:[%s0 + $0x1a8] sm:$0xff]
    %v206 = vld [vmem:[%s0 + $0x1b0] sm:$0xff]
    %v207 = vld [vmem:[%s0 + $0x1b8] sm:$0xff]
    %v208 = vld [vmem:[%s0 + $0x1c0] sm:$0xff]
    %v209 = vld [vmem:[%s0 + $0x1c8] sm:$0xff]
    %v210 = vld [vmem:[%s0 + $0x1d0] sm:$0xff]
    %v211 = vld [vmem:[%s0 + $0x1d8] sm:$0xff]
    %v212 = vld [vmem:[%s0 + $0x1e0] sm:$0xff]
    %v213 = vld [vmem:[%s0 + $0x1e8] sm:$0xff]
    %v214 = vld [vmem:[%s0 + $0x1f0] sm:$0xff]
    %v215 = vld [vmem:[%s0 + $0x1f8] sm:$0xff]
    %v216 = vld [vmem:[%s1] sm:$0xf]
    %v217 = vld [vmem:[%s1 + $0x4] sm:$0xf]
    %v218 = vld [vmem:[%s1 + $0x8] sm:$0xf]
    %v219 = vld [vmem:[%s1 + $0xc] sm:$0xf]
    %v220 = vld [vmem:[%s1 + $0x10] sm:$0xf]
    %v221 = vld [vmem:[%s1 + $0x14] sm:$0xf]
    %v222 = vld [vmem:[%s1 + $0x18] sm:$0xf]
    %v223 = vld [vmem:[%s1 + $0x1c] sm:$0xf]
    %v224 = vld [vmem:[%s1 + $0x20] sm:$0xf]
    %v225 = vld [vmem:[%s1 + $0x24] sm:$0xf]
    %v226 = vld [vmem:[%s1 + $0x28] sm:$0xf]
    %v227 = vld [vmem:[%s1 + $0x2c] sm:$0xf]
    %v228 = vld [vmem:[%s1 + $0x30] sm:$0xf]
    %v229 = vld [vmem:[%s1 + $0x34] sm:$0xf]
    %v230 = vld [vmem:[%s1 + $0x38] sm:$0xf]
    %v231 = vld [vmem:[%s1 + $0x3c] sm:$0xf]
    %v232 = vld [vmem:[%s1 + $0x40] sm:$0xf]
    %v233 = vld [vmem:[%s1 + $0x44] sm:$0xf]
    %v234 = vld [vmem:[%s1 + $0x48] sm:$0xf]
    %v235 = vld [vmem:[%s1 + $0x4c] sm:$0xf]
    %v236 = vld [vmem:[%s1 + $0x50] sm:$0xf]
    %v237 = vld [vmem:[%s1 + $0x54] sm:$0xf]
    %v238 = vld [vmem:[%s1 + $0x58] sm:$0xf]
    %v239 = vld [vmem:[%s1 + $0x5c] sm:$0xf]
    %v240 = vld [vmem:[%s1 + $0x60] sm:$0xf]
    %v241 = vld [vmem:[%s1 + $0x64] sm:$0xf]
    %v242 = vld [vmem:[%s1 + $0x68] sm:$0xf]
    %v243 = vld [vmem:[%s1 + $0x6c] sm:$0xf]
    %v244 = vld [vmem:[%s1 + $0x70] sm:$0xf]
    %v245 = vld [vmem:[%s1 + $0x74] sm:$0xf]
    %v246 = vld [vmem:[%s1 + $0x78] sm:$0xf]
    %v247 = vld [vmem:[%s1 + $0x7c] sm:$0xf]
    %v312 = vunpack.c.l.b16 %v152
    %v313 = vunpack.c.h.b16 %v152
    %v314 = vunpack.c.l.b16 %v153
    %v315 = vunpack.c.h.b16 %v153
    %v316 = vunpack.c.l.b16 %v154
    %v317 = vunpack.c.h.b16 %v154
    %v318 = vunpack.c.l.b16 %v155
    %v319 = vunpack.c.h.b16 %v155
    %v320 = vunpack.c.l.b16 %v156
    %v321 = vunpack.c.h.b16 %v156
    %v322 = vunpack.c.l.b16 %v157
    %v323 = vunpack.c.h.b16 %v157
    %v324 = vunpack.c.l.b16 %v158
    %v325 = vunpack.c.h.b16 %v158
    %v326 = vunpack.c.l.b16 %v159
    %v327 = vunpack.c.h.b16 %v159
    %v328 = vunpack.c.l.b16 %v160
    %v329 = vunpack.c.h.b16 %v160
    %v330 = vunpack.c.l.b16 %v161
    %v331 = vunpack.c.h.b16 %v161
    %v332 = vunpack.c.l.b16 %v162
    %v333 = vunpack.c.h.b16 %v162
    %v334 = vunpack.c.l.b16 %v163
    %v335 = vunpack.c.h.b16 %v163
    %v336 = vunpack.c.l.b16 %v164
    %v337 = vunpack.c.h.b16 %v164
    %v338 = vunpack.c.l.b16 %v165
    %v339 = vunpack.c.h.b16 %v165
    %v340 = vunpack.c.l.b16 %v166
    %v341 = vunpack.c.h.b16 %v166
    %v342 = vunpack.c.l.b16 %v167
    %v343 = vunpack.c.h.b16 %v167
    %v344 = vunpack.c.l.b16 %v168
    %v345 = vunpack.c.h.b16 %v168
    %v346 = vunpack.c.l.b16 %v169
    %v347 = vunpack.c.h.b16 %v169
    %v348 = vunpack.c.l.b16 %v170
    %v349 = vunpack.c.h.b16 %v170
    %v350 = vunpack.c.l.b16 %v171
    %v351 = vunpack.c.h.b16 %v171
    %v352 = vunpack.c.l.b16 %v172
    %v353 = vunpack.c.h.b16 %v172
    %v354 = vunpack.c.l.b16 %v173
    %v355 = vunpack.c.h.b16 %v173
    %v356 = vunpack.c.l.b16 %v174
    %v357 = vunpack.c.h.b16 %v174
    %v358 = vunpack.c.l.b16 %v175
    %v359 = vunpack.c.h.b16 %v175
    %v360 = vunpack.c.l.b16 %v176
    %v361 = vunpack.c.h.b16 %v176
    %v362 = vunpack.c.l.b16 %v177
    %v363 = vunpack.c.h.b16 %v177
    %v364 = vunpack.c.l.b16 %v178
    %v365 = vunpack.c.h.b16 %v178
    %v366 = vunpack.c.l.b16 %v179
    %v367 = vunpack.c.h.b16 %v179
    %v368 = vunpack.c.l.b16 %v180
    %v369 = vunpack.c.h.b16 %v180
    %v370 = vunpack.c.l.b16 %v181
    %v371 = vunpack.c.h.b16 %v181
    %v372 = vunpack.c.l.b16 %v182
    %v373 = vunpack.c.h.b16 %v182
    %v374 = vunpack.c.l.b16 %v183
    %v375 = vunpack.c.h.b16 %v183
    %v376 = vunpack.c.l.b16 %v184
    %v377 = vunpack.c.h.b16 %v184
    %v378 = vunpack.c.l.b16 %v185
    %v379 = vunpack.c.h.b16 %v185
    %v380 = vunpack.c.l.b16 %v186
    %v381 = vunpack.c.h.b16 %v186
    %v382 = vunpack.c.l.b16 %v187
    %v383 = vunpack.c.h.b16 %v187
    %v384 = vunpack.c.l.b16 %v188
    %v385 = vunpack.c.h.b16 %v188
    %v386 = vunpack.c.l.b16 %v189
    %v387 = vunpack.c.h.b16 %v189
    %v388 = vunpack.c.l.b16 %v190
    %v389 = vunpack.c.h.b16 %v190
    %v390 = vunpack.c.l.b16 %v191
    %v391 = vunpack.c.h.b16 %v191
    %v392 = vunpack.c.l.b16 %v192
    %v393 = vunpack.c.h.b16 %v192
    %v394 = vunpack.c.l.b16 %v193
    %v395 = vunpack.c.h.b16 %v193
    %v396 = vunpack.c.l.b16 %v194
    %v397 = vunpack.c.h.b16 %v194
    %v398 = vunpack.c.l.b16 %v195
    %v399 = vunpack.c.h.b16 %v195
    %v400 = vunpack.c.l.b16 %v196
    %v401 = vunpack.c.h.b16 %v196
    %v402 = vunpack.c.l.b16 %v197
    %v403 = vunpack.c.h.b16 %v197
    %v404 = vunpack.c.l.b16 %v198
    %v405 = vunpack.c.h.b16 %v198
    %v406 = vunpack.c.l.b16 %v199
    %v407 = vunpack.c.h.b16 %v199
    %v408 = vunpack.c.l.b16 %v200
    %v409 = vunpack.c.h.b16 %v200
    %v410 = vunpack.c.l.b16 %v201
    %v411 = vunpack.c.h.b16 %v201
    %v412 = vunpack.c.l.b16 %v202
    %v413 = vunpack.c.h.b16 %v202
    %v414 = vunpack.c.l.b16 %v203
    %v415 = vunpack.c.h.b16 %v203
    %v416 = vunpack.c.l.b16 %v204
    %v417 = vunpack.c.h.b16 %v204
    %v418 = vunpack.c.l.b16 %v205
    %v419 = vunpack.c.h.b16 %v205
    %v420 = vunpack.c.l.b16 %v206
    %v421 = vunpack.c.h.b16 %v206
    %v422 = vunpack.c.l.b16 %v207
    %v423 = vunpack.c.h.b16 %v207
    %v424 = vunpack.c.l.b16 %v208
    %v425 = vunpack.c.h.b16 %v208
    %v426 = vunpack.c.l.b16 %v209
    %v427 = vunpack.c.h.b16 %v209
    %v428 = vunpack.c.l.b16 %v210
    %v429 = vunpack.c.h.b16 %v210
    %v430 = vunpack.c.l.b16 %v211
    %v431 = vunpack.c.h.b16 %v211
    %v432 = vunpack.c.l.b16 %v212
    %v433 = vunpack.c.h.b16 %v212
    %v434 = vunpack.c.l.b16 %v213
    %v435 = vunpack.c.h.b16 %v213
    %v436 = vunpack.c.l.b16 %v214
    %v437 = vunpack.c.h.b16 %v214
    %v438 = vunpack.c.l.b16 %v215
    %v439 = vunpack.c.h.b16 %v215
    %v440 = vpack.c.b16 %v314, %v312
    %v441 = vpack.c.b16 %v315, %v313
    %v442 = vpack.c.b16 %v318, %v316
    %v443 = vpack.c.b16 %v319, %v317
    %v444 = vpack.c.b16 %v322, %v320
    %v445 = vpack.c.b16 %v323, %v321
    %v446 = vpack.c.b16 %v326, %v324
    %v447 = vpack.c.b16 %v327, %v325
    %v448 = vpack.c.b16 %v330, %v328
    %v449 = vpack.c.b16 %v331, %v329
    %v450 = vpack.c.b16 %v334, %v332
    %v451 = vpack.c.b16 %v335, %v333
    %v452 = vpack.c.b16 %v338, %v336
    %v453 = vpack.c.b16 %v339, %v337
    %v454 = vpack.c.b16 %v342, %v340
    %v455 = vpack.c.b16 %v343, %v341
    %v456 = vpack.c.b16 %v346, %v344
    %v457 = vpack.c.b16 %v347, %v345
    %v458 = vpack.c.b16 %v350, %v348
    %v459 = vpack.c.b16 %v351, %v349
    %v460 = vpack.c.b16 %v354, %v352
    %v461 = vpack.c.b16 %v355, %v353
    %v462 = vpack.c.b16 %v358, %v356
    %v463 = vpack.c.b16 %v359, %v357
    %v464 = vpack.c.b16 %v362, %v360
    %v465 = vpack.c.b16 %v363, %v361
    %v466 = vpack.c.b16 %v366, %v364
    %v467 = vpack.c.b16 %v367, %v365
    %v468 = vpack.c.b16 %v370, %v368
    %v469 = vpack.c.b16 %v371, %v369
    %v470 = vpack.c.b16 %v374, %v372
    %v471 = vpack.c.b16 %v375, %v373
    %v472 = vpack.c.b16 %v378, %v376
    %v473 = vpack.c.b16 %v379, %v377
    %v474 = vpack.c.b16 %v382, %v380
    %v475 = vpack.c.b16 %v383, %v381
    %v476 = vpack.c.b16 %v386, %v384
    %v477 = vpack.c.b16 %v387, %v385
    %v478 = vpack.c.b16 %v390, %v388
    %v479 = vpack.c.b16 %v391, %v389
    %v480 = vpack.c.b16 %v394, %v392
    %v481 = vpack.c.b16 %v395, %v393
    %v482 = vpack.c.b16 %v398, %v396
    %v483 = vpack.c.b16 %v399, %v397
    %v484 = vpack.c.b16 %v402, %v400
    %v485 = vpack.c.b16 %v403, %v401
    %v486 = vpack.c.b16 %v406, %v404
    %v487 = vpack.c.b16 %v407, %v405
    %v488 = vpack.c.b16 %v410, %v408
    %v489 = vpack.c.b16 %v411, %v409
    %v490 = vpack.c.b16 %v414, %v412
    %v491 = vpack.c.b16 %v415, %v413
    %v492 = vpack.c.b16 %v418, %v416
    %v493 = vpack.c.b16 %v419, %v417
    %v494 = vpack.c.b16 %v422, %v420
    %v495 = vpack.c.b16 %v423, %v421
    %v496 = vpack.c.b16 %v426, %v424
    %v497 = vpack.c.b16 %v427, %v425
    %v498 = vpack.c.b16 %v430, %v428
    %v499 = vpack.c.b16 %v431, %v429
    %v500 = vpack.c.b16 %v434, %v432
    %v501 = vpack.c.b16 %v435, %v433
    %v502 = vpack.c.b16 %v438, %v436
    %v503 = vpack.c.b16 %v439, %v437
    %v600 = vunpack.c.l.b16 %v216
    %v601 = vunpack.c.l.b16 %v217
    %v602 = vunpack.c.l.b16 %v218
    %v603 = vunpack.c.l.b16 %v219
    %v604 = vunpack.c.l.b16 %v220
    %v605 = vunpack.c.l.b16 %v221
    %v606 = vunpack.c.l.b16 %v222
    %v607 = vunpack.c.l.b16 %v223
    %v608 = vunpack.c.l.b16 %v224
    %v609 = vunpack.c.l.b16 %v225
    %v610 = vunpack.c.l.b16 %v226
    %v611 = vunpack.c.l.b16 %v227
    %v612 = vunpack.c.l.b16 %v228
    %v613 = vunpack.c.l.b16 %v229
    %v614 = vunpack.c.l.b16 %v230
    %v615 = vunpack.c.l.b16 %v231
    %v616 = vunpack.c.l.b16 %v232
    %v617 = vunpack.c.l.b16 %v233
    %v618 = vunpack.c.l.b16 %v234
    %v619 = vunpack.c.l.b16 %v235
    %v620 = vunpack.c.l.b16 %v236
    %v621 = vunpack.c.l.b16 %v237
    %v622 = vunpack.c.l.b16 %v238
    %v623 = vunpack.c.l.b16 %v239
    %v624 = vunpack.c.l.b16 %v240
    %v625 = vunpack.c.l.b16 %v241
    %v626 = vunpack.c.l.b16 %v242
    %v627 = vunpack.c.l.b16 %v243
    %v628 = vunpack.c.l.b16 %v244
    %v629 = vunpack.c.l.b16 %v245
    %v630 = vunpack.c.l.b16 %v246
    %v631 = vunpack.c.l.b16 %v247
    %v632 = vpack.c.b16 %v601, %v600
    %v633 = vpack.c.b16 %v603, %v602
    %v634 = vpack.c.b16 %v605, %v604
    %v635 = vpack.c.b16 %v607, %v606
    %v636 = vpack.c.b16 %v609, %v608
    %v637 = vpack.c.b16 %v611, %v610
    %v638 = vpack.c.b16 %v613, %v612
    %v639 = vpack.c.b16 %v615, %v614
    %v640 = vpack.c.b16 %v617, %v616
    %v641 = vpack.c.b16 %v619, %v618
    %v642 = vpack.c.b16 %v621, %v620
    %v643 = vpack.c.b16 %v623, %v622
    %v644 = vpack.c.b16 %v625, %v624
    %v645 = vpack.c.b16 %v627, %v626
    %v646 = vpack.c.b16 %v629, %v628
    %v647 = vpack.c.b16 %v631, %v630
    %664 = vmatprep.subr.bf16.mxu0 0
    %665 = vmatpush1.bf16.msra.mxu0 %v639
    %666 = vmatprep.subr.bf16.mxu0 0
    %667 = vmatpush1.bf16.msra.mxu0 %v638
    %668 = vmatprep.subr.bf16.mxu0 0
    %669 = vmatpush1.bf16.msra.mxu0 %v637
    %670 = vmatprep.subr.bf16.mxu0 0
    %671 = vmatpush1.bf16.msra.mxu0 %v636
    %672 = vmatprep.subr.bf16.mxu0 0
    %673 = vmatpush1.bf16.msra.mxu0 %v635
    %674 = vmatprep.subr.bf16.mxu0 0
    %675 = vmatpush1.bf16.msra.mxu0 %v634
    %676 = vmatprep.subr.bf16.mxu0 0
    %677 = vmatpush1.bf16.msra.mxu0 %v633
    %678 = vmatprep.subr.bf16.mxu0 0
    %679 = vmatpush1.bf16.msra.mxu0 %v632
    %680 = vmatprep.subr.bf16.mxu0 0
    %681 = vmatpush2.bf16.msra.mxu0 %v647
    %682 = vmatprep.subr.bf16.mxu0 0
    %683 = vmatpush2.bf16.msra.mxu0 %v646
    %684 = vmatprep.subr.bf16.mxu0 0
    %685 = vmatpush2.bf16.msra.mxu0 %v645
    %686 = vmatprep.subr.bf16.mxu0 0
    %687 = vmatpush2.bf16.msra.mxu0 %v644
    %688 = vmatprep.subr.bf16.mxu0 0
    %689 = vmatpush2.bf16.msra.mxu0 %v643
    %690 = vmatprep.subr.bf16.mxu0 0
    %691 = vmatpush2.bf16.msra.mxu0 %v642
    %692 = vmatprep.subr.bf16.mxu0 0
    %693 = vmatpush2.bf16.msra.mxu0 %v641
    %694 = vmatprep.subr.bf16.mxu0 0
    %695 = vmatpush2.bf16.msra.mxu0 %v640
    %696 = vmatprep.mubr.bf16.mxu0 %v441
    %697 = vmatmul.mubr.bf16.gmra.mxu0 %v440
    %v698 = vpop.f32.mrf.mxu0
    %v699 = vadd.f32 0.0, %v698
    %v700 = vpop.f32.mrf.mxu0
    %v701 = vpop.f32.mrf.mxu0
    %v702 = vadd.f32 0.0, %v701
    %v703 = vpop.f32.mrf.mxu0
    %704 = vmatprep.mubr.bf16.mxu0 %v443
    %705 = vmatmul.mubr.bf16.gmra.mxu0 %v442
    %v706 = vpop.f32.mrf.mxu0
    %v707 = vadd.f32 0.0, %v706
    %v708 = vpop.f32.mrf.mxu0
    %v709 = vpop.f32.mrf.mxu0
    %v710 = vadd.f32 0.0, %v709
    %v711 = vpop.f32.mrf.mxu0
    %712 = vmatprep.mubr.bf16.mxu0 %v445
    %713 = vmatmul.mubr.bf16.gmra.mxu0 %v444
    %v714 = vpop.f32.mrf.mxu0
    %v715 = vadd.f32 0.0, %v714
    %v716 = vpop.f32.mrf.mxu0
    %v717 = vpop.f32.mrf.mxu0
    %v718 = vadd.f32 0.0, %v717
    %v719 = vpop.f32.mrf.mxu0
    %720 = vmatprep.mubr.bf16.mxu0 %v447
    %721 = vmatmul.mubr.bf16.gmra.mxu0 %v446
    %v722 = vpop.f32.mrf.mxu0
    %v723 = vadd.f32 0.0, %v722
    %v724 = vpop.f32.mrf.mxu0
    %v725 = vpop.f32.mrf.mxu0
    %v726 = vadd.f32 0.0, %v725
    %v727 = vpop.f32.mrf.mxu0
    %728 = vmatprep.mubr.bf16.mxu0 %v449
    %729 = vmatmul.mubr.bf16.gmra.mxu0 %v448
    %v730 = vpop.f32.mrf.mxu0
    %v731 = vadd.f32 0.0, %v730
    %v732 = vpop.f32.mrf.mxu0
    %v733 = vpop.f32.mrf.mxu0
    %v734 = vadd.f32 0.0, %v733
    %v735 = vpop.f32.mrf.mxu0
    %736 = vmatprep.mubr.bf16.mxu0 %v451
    %737 = vmatmul.mubr.bf16.gmra.mxu0 %v450
    %v738 = vpop.f32.mrf.mxu0
    %v739 = vadd.f32 0.0, %v738
    %v740 = vpop.f32.mrf.mxu0
    %v741 = vpop.f32.mrf.mxu0
    %v742 = vadd.f32 0.0, %v741
    %v743 = vpop.f32.mrf.mxu0
    %744 = vmatprep.mubr.bf16.mxu0 %v453
    %745 = vmatmul.mubr.bf16.gmra.mxu0 %v452
    %v746 = vpop.f32.mrf.mxu0
    %v747 = vadd.f32 0.0, %v746
    %v748 = vpop.f32.mrf.mxu0
    %v749 = vpop.f32.mrf.mxu0
    %v750 = vadd.f32 0.0, %v749
    %v751 = vpop.f32.mrf.mxu0
    %752 = vmatprep.mubr.bf16.mxu0 %v455
    %753 = vmatmul.mubr.bf16.gmra.mxu0 %v454
    %v754 = vpop.f32.mrf.mxu0
    %v755 = vadd.f32 0.0, %v754
    %v756 = vpop.f32.mrf.mxu0
    %v757 = vpop.f32.mrf.mxu0
    %v758 = vadd.f32 0.0, %v757
    %v759 = vpop.f32.mrf.mxu0
    %760 = vmatprep.mubr.bf16.mxu0 %v457
    %761 = vmatmul.mubr.bf16.gmra.mxu0 %v456
    %v762 = vpop.f32.mrf.mxu0
    %v763 = vadd.f32 0.0, %v762
    %v764 = vpop.f32.mrf.mxu0
    %v765 = vpop.f32.mrf.mxu0
    %v766 = vadd.f32 0.0, %v765
    %v767 = vpop.f32.mrf.mxu0
    %768 = vmatprep.mubr.bf16.mxu0 %v459
    %769 = vmatmul.mubr.bf16.gmra.mxu0 %v458
    %v770 = vpop.f32.mrf.mxu0
    %v771 = vadd.f32 0.0, %v770
    %v772 = vpop.f32.mrf.mxu0
    %v773 = vpop.f32.mrf.mxu0
    %v774 = vadd.f32 0.0, %v773
    %v775 = vpop.f32.mrf.mxu0
    %776 = vmatprep.mubr.bf16.mxu0 %v461
    %777 = vmatmul.mubr.bf16.gmra.mxu0 %v460
    %v778 = vpop.f32.mrf.mxu0
    %v779 = vadd.f32 0.0, %v778
    %v780 = vpop.f32.mrf.mxu0
    %v781 = vpop.f32.mrf.mxu0
    %v782 = vadd.f32 0.0, %v781
    %v783 = vpop.f32.mrf.mxu0
    %784 = vmatprep.mubr.bf16.mxu0 %v463
    %785 = vmatmul.mubr.bf16.gmra.mxu0 %v462
    %v786 = vpop.f32.mrf.mxu0
    %v787 = vadd.f32 0.0, %v786
    %v788 = vpop.f32.mrf.mxu0
    %v789 = vpop.f32.mrf.mxu0
    %v790 = vadd.f32 0.0, %v789
    %v791 = vpop.f32.mrf.mxu0
    %792 = vmatprep.mubr.bf16.mxu0 %v465
    %793 = vmatmul.mubr.bf16.gmra.mxu0 %v464
    %v794 = vpop.f32.mrf.mxu0
    %v795 = vadd.f32 0.0, %v794
    %v796 = vpop.f32.mrf.mxu0
    %v797 = vpop.f32.mrf.mxu0
    %v798 = vadd.f32 0.0, %v797
    %v799 = vpop.f32.mrf.mxu0
    %800 = vmatprep.mubr.bf16.mxu0 %v467
    %801 = vmatmul.mubr.bf16.gmra.mxu0 %v466
    %v802 = vpop.f32.mrf.mxu0
    %v803 = vadd.f32 0.0, %v802
    %v804 = vpop.f32.mrf.mxu0
    %v805 = vpop.f32.mrf.mxu0
    %v806 = vadd.f32 0.0, %v805
    %v807 = vpop.f32.mrf.mxu0
    %808 = vmatprep.mubr.bf16.mxu0 %v469
    %809 = vmatmul.mubr.bf16.gmra.mxu0 %v468
    %v810 = vpop.f32.mrf.mxu0
    %v811 = vadd.f32 0.0, %v810
    %v812 = vpop.f32.mrf.mxu0
    %v813 = vpop.f32.mrf.mxu0
    %v814 = vadd.f32 0.0, %v813
    %v815 = vpop.f32.mrf.mxu0
    %816 = vmatprep.mubr.bf16.mxu0 %v471
    %817 = vmatmul.mubr.bf16.gmra.mxu0 %v470
    %v818 = vpop.f32.mrf.mxu0
    %v819 = vadd.f32 0.0, %v818
    %v820 = vpop.f32.mrf.mxu0
    %v821 = vpop.f32.mrf.mxu0
    %v822 = vadd.f32 0.0, %v821
    %v823 = vpop.f32.mrf.mxu0
    %824 = vmatprep.mubr.bf16.mxu0 %v473
    %825 = vmatmul.mubr.bf16.gmra.mxu0 %v472
    %v826 = vpop.f32.mrf.mxu0
    %v827 = vadd.f32 0.0, %v826
    %v828 = vpop.f32.mrf.mxu0
    %v829 = vpop.f32.mrf.mxu0
    %v830 = vadd.f32 0.0, %v829
    %v831 = vpop.f32.mrf.mxu0
    %832 = vmatprep.mubr.bf16.mxu0 %v475
    %833 = vmatmul.mubr.bf16.gmra.mxu0 %v474
    %v834 = vpop.f32.mrf.mxu0
    %v835 = vadd.f32 0.0, %v834
    %v836 = vpop.f32.mrf.mxu0
    %v837 = vpop.f32.mrf.mxu0
    %v838 = vadd.f32 0.0, %v837
    %v839 = vpop.f32.mrf.mxu0
    %840 = vmatprep.mubr.bf16.mxu0 %v477
    %841 = vmatmul.mubr.bf16.gmra.mxu0 %v476
    %v842 = vpop.f32.mrf.mxu0
    %v843 = vadd.f32 0.0, %v842
    %v844 = vpop.f32.mrf.mxu0
    %v845 = vpop.f32.mrf.mxu0
    %v846 = vadd.f32 0.0, %v845
    %v847 = vpop.f32.mrf.mxu0
    %848 = vmatprep.mubr.bf16.mxu0 %v479
    %849 = vmatmul.mubr.bf16.gmra.mxu0 %v478
    %v850 = vpop.f32.mrf.mxu0
    %v851 = vadd.f32 0.0, %v850
    %v852 = vpop.f32.mrf.mxu0
    %v853 = vpop.f32.mrf.mxu0
    %v854 = vadd.f32 0.0, %v853
    %v855 = vpop.f32.mrf.mxu0
    %856 = vmatprep.mubr.bf16.mxu0 %v481
    %857 = vmatmul.mubr.bf16.gmra.mxu0 %v480
    %v858 = vpop.f32.mrf.mxu0
    %v859 = vadd.f32 0.0, %v858
    %v860 = vpop.f32.mrf.mxu0
    %v861 = vpop.f32.mrf.mxu0
    %v862 = vadd.f32 0.0, %v861
    %v863 = vpop.f32.mrf.mxu0
    %864 = vmatprep.mubr.bf16.mxu0 %v483
    %865 = vmatmul.mubr.bf16.gmra.mxu0 %v482
    %v866 = vpop.f32.mrf.mxu0
    %v867 = vadd.f32 0.0, %v866
    %v868 = vpop.f32.mrf.mxu0
    %v869 = vpop.f32.mrf.mxu0
    %v870 = vadd.f32 0.0, %v869
    %v871 = vpop.f32.mrf.mxu0
    %872 = vmatprep.mubr.bf16.mxu0 %v485
    %873 = vmatmul.mubr.bf16.gmra.mxu0 %v484
    %v874 = vpop.f32.mrf.mxu0
    %v875 = vadd.f32 0.0, %v874
    %v876 = vpop.f32.mrf.mxu0
    %v877 = vpop.f32.mrf.mxu0
    %v878 = vadd.f32 0.0, %v877
    %v879 = vpop.f32.mrf.mxu0
    %880 = vmatprep.mubr.bf16.mxu0 %v487
    %881 = vmatmul.mubr.bf16.gmra.mxu0 %v486
    %v882 = vpop.f32.mrf.mxu0
    %v883 = vadd.f32 0.0, %v882
    %v884 = vpop.f32.mrf.mxu0
    %v885 = vpop.f32.mrf.mxu0
    %v886 = vadd.f32 0.0, %v885
    %v887 = vpop.f32.mrf.mxu0
    %888 = vmatprep.mubr.bf16.mxu0 %v489
    %889 = vmatmul.mubr.bf16.gmra.mxu0 %v488
    %v890 = vpop.f32.mrf.mxu0
    %v891 = vadd.f32 0.0, %v890
    %v892 = vpop.f32.mrf.mxu0
    %v893 = vpop.f32.mrf.mxu0
    %v894 = vadd.f32 0.0, %v893
    %v895 = vpop.f32.mrf.mxu0
    %896 = vmatprep.mubr.bf16.mxu0 %v491
    %897 = vmatmul.mubr.bf16.gmra.mxu0 %v490
    %v898 = vpop.f32.mrf.mxu0
    %v899 = vadd.f32 0.0, %v898
    %v900 = vpop.f32.mrf.mxu0
    %v901 = vpop.f32.mrf.mxu0
    %v902 = vadd.f32 0.0, %v901
    %v903 = vpop.f32.mrf.mxu0
    %904 = vmatprep.mubr.bf16.mxu0 %v493
    %905 = vmatmul.mubr.bf16.gmra.mxu0 %v492
    %v906 = vpop.f32.mrf.mxu0
    %v907 = vadd.f32 0.0, %v906
    %v908 = vpop.f32.mrf.mxu0
    %v909 = vpop.f32.mrf.mxu0
    %v910 = vadd.f32 0.0, %v909
    %v911 = vpop.f32.mrf.mxu0
    %912 = vmatprep.mubr.bf16.mxu0 %v495
    %913 = vmatmul.mubr.bf16.gmra.mxu0 %v494
    %v914 = vpop.f32.mrf.mxu0
    %v915 = vadd.f32 0.0, %v914
    %v916 = vpop.f32.mrf.mxu0
    %v917 = vpop.f32.mrf.mxu0
    %v918 = vadd.f32 0.0, %v917
    %v919 = vpop.f32.mrf.mxu0
    %920 = vmatprep.mubr.bf16.mxu0 %v497
    %921 = vmatmul.mubr.bf16.gmra.mxu0 %v496
    %v922 = vpop.f32.mrf.mxu0
    %v923 = vadd.f32 0.0, %v922
    %v924 = vpop.f32.mrf.mxu0
    %v925 = vpop.f32.mrf.mxu0
    %v926 = vadd.f32 0.0, %v925
    %v927 = vpop.f32.mrf.mxu0
    %928 = vmatprep.mubr.bf16.mxu0 %v499
    %929 = vmatmul.mubr.bf16.gmra.mxu0 %v498
    %v930 = vpop.f32.mrf.mxu0
    %v931 = vadd.f32 0.0, %v930
    %v932 = vpop.f32.mrf.mxu0
    %v933 = vpop.f32.mrf.mxu0
    %v934 = vadd.f32 0.0, %v933
    %v935 = vpop.f32.mrf.mxu0
    %936 = vmatprep.mubr.bf16.mxu0 %v501
    %937 = vmatmul.mubr.bf16.gmra.mxu0 %v500
    %v938 = vpop.f32.mrf.mxu0
    %v939 = vadd.f32 0.0, %v938
    %v940 = vpop.f32.mrf.mxu0
    %v941 = vpop.f32.mrf.mxu0
    %v942 = vadd.f32 0.0, %v941
    %v943 = vpop.f32.mrf.mxu0
    %944 = vmatprep.mubr.bf16.mxu0 %v503
    %945 = vmatmul.mubr.bf16.gmra.mxu0 %v502
    %v946 = vpop.f32.mrf.mxu0
    %v947 = vadd.f32 0.0, %v946
    %v948 = vpop.f32.mrf.mxu0
    %v949 = vpop.f32.mrf.mxu0
    %v950 = vadd.f32 0.0, %v949
    %v951 = vpop.f32.mrf.mxu0
    %952 = vdwg.mxu0
    %v953 = vadd.f32 %v88, %v699
    %v954 = vadd.f32 %v89, %v702
    %v955 = vadd.f32 %v90, %v707
    %v956 = vadd.f32 %v91, %v710
    %v957 = vadd.f32 %v92, %v715
    %v958 = vadd.f32 %v93, %v718
    %v959 = vadd.f32 %v94, %v723
    %v960 = vadd.f32 %v95, %v726
    %v961 = vadd.f32 %v96, %v731
    %v962 = vadd.f32 %v97, %v734
    %v963 = vadd.f32 %v98, %v739
    %v964 = vadd.f32 %v99, %v742
    %v965 = vadd.f32 %v100, %v747
    %v966 = vadd.f32 %v101, %v750
    %v967 = vadd.f32 %v102, %v755
    %v968 = vadd.f32 %v103, %v758
    %v969 = vadd.f32 %v104, %v763
    %v970 = vadd.f32 %v105, %v766
    %v971 = vadd.f32 %v106, %v771
    %v972 = vadd.f32 %v107, %v774
    %v973 = vadd.f32 %v108, %v779
    %v974 = vadd.f32 %v109, %v782
    %v975 = vadd.f32 %v110, %v787
    %v976 = vadd.f32 %v111, %v790
    %v977 = vadd.f32 %v112, %v795
    %v978 = vadd.f32 %v113, %v798
    %v979 = vadd.f32 %v114, %v803
    %v980 = vadd.f32 %v115, %v806
    %v981 = vadd.f32 %v116, %v811
    %v982 = vadd.f32 %v117, %v814
    %v983 = vadd.f32 %v118, %v819
    %v984 = vadd.f32 %v119, %v822
    %v985 = vadd.f32 %v120, %v827
    %v986 = vadd.f32 %v121, %v830
    %v987 = vadd.f32 %v122, %v835
    %v988 = vadd.f32 %v123, %v838
    %v989 = vadd.f32 %v124, %v843
    %v990 = vadd.f32 %v125, %v846
    %v991 = vadd.f32 %v126, %v851
    %v992 = vadd.f32 %v127, %v854
    %v993 = vadd.f32 %v128, %v859
    %v994 = vadd.f32 %v129, %v862
    %v995 = vadd.f32 %v130, %v867
    %v996 = vadd.f32 %v131, %v870
    %v997 = vadd.f32 %v132, %v875
    %v998 = vadd.f32 %v133, %v878
    %v999 = vadd.f32 %v134, %v883
    %v1000 = vadd.f32 %v135, %v886
    %v1001 = vadd.f32 %v136, %v891
    %v1002 = vadd.f32 %v137, %v894
    %v1003 = vadd.f32 %v138, %v899
    %v1004 = vadd.f32 %v139, %v902
    %v1005 = vadd.f32 %v140, %v907
    %v1006 = vadd.f32 %v141, %v910
    %v1007 = vadd.f32 %v142, %v915
    %v1008 = vadd.f32 %v143, %v918
    %v1009 = vadd.f32 %v144, %v923
    %v1010 = vadd.f32 %v145, %v926
    %v1011 = vadd.f32 %v146, %v931
    %v1012 = vadd.f32 %v147, %v934
    %v1013 = vadd.f32 %v148, %v939
    %v1014 = vadd.f32 %v149, %v942
    %v1015 = vadd.f32 %v150, %v947
    %v1016 = vadd.f32 %v151, %v950
    %vm1017 = vcmask 523264
    %1018 = vst.msk [vmem:[#allocation2] sm:$0xff] %vm1017, %v953
    %1019 = vst.msk [vmem:[#allocation2 + $0x8] sm:$0xff] %vm1017, %v954
    %1020 = vst.msk [vmem:[#allocation2 + $0x10] sm:$0xff] %vm1017, %v955
    %1021 = vst.msk [vmem:[#allocation2 + $0x18] sm:$0xff] %vm1017, %v956
    %1022 = vst.msk [vmem:[#allocation2 + $0x20] sm:$0xff] %vm1017, %v957
    %1023 = vst.msk [vmem:[#allocation2 + $0x28] sm:$0xff] %vm1017, %v958
    %1024 = vst.msk [vmem:[#allocation2 + $0x30] sm:$0xff] %vm1017, %v959
    %1025 = vst.msk [vmem:[#allocation2 + $0x38] sm:$0xff] %vm1017, %v960
    %1026 = vst.msk [vmem:[#allocation2 + $0x40] sm:$0xff] %vm1017, %v961
    %1027 = vst.msk [vmem:[#allocation2 + $0x48] sm:$0xff] %vm1017, %v962
    %1028 = vst.msk [vmem:[#allocation2 + $0x50] sm:$0xff] %vm1017, %v963
    %1029 = vst.msk [vmem:[#allocation2 + $0x58] sm:$0xff] %vm1017, %v964
    %1030 = vst.msk [vmem:[#allocation2 + $0x60] sm:$0xff] %vm1017, %v965
    %1031 = vst.msk [vmem:[#allocation2 + $0x68] sm:$0xff] %vm1017, %v966
    %1032 = vst.msk [vmem:[#allocation2 + $0x70] sm:$0xff] %vm1017, %v967
    %1033 = vst.msk [vmem:[#allocation2 + $0x78] sm:$0xff] %vm1017, %v968
    %1034 = vst.msk [vmem:[#allocation2 + $0x80] sm:$0xff] %vm1017, %v969
    %1035 = vst.msk [vmem:[#allocation2 + $0x88] sm:$0xff] %vm1017, %v970
    %1036 = vst.msk [vmem:[#allocation2 + $0x90] sm:$0xff] %vm1017, %v971
    %1037 = vst.msk [vmem:[#allocation2 + $0x98] sm:$0xff] %vm1017, %v972
    %1038 = vst.msk [vmem:[#allocation2 + $0xa0] sm:$0xff] %vm1017, %v973
    %1039 = vst.msk [vmem:[#allocation2 + $0xa8] sm:$0xff] %vm1017, %v974
    %1040 = vst.msk [vmem:[#allocation2 + $0xb0] sm:$0xff] %vm1017, %v975
    %1041 = vst.msk [vmem:[#allocation2 + $0xb8] sm:$0xff] %vm1017, %v976
    %1042 = vst.msk [vmem:[#allocation2 + $0xc0] sm:$0xff] %vm1017, %v977
    %1043 = vst.msk [vmem:[#allocation2 + $0xc8] sm:$0xff] %vm1017, %v978
    %1044 = vst.msk [vmem:[#allocation2 + $0xd0] sm:$0xff] %vm1017, %v979
    %1045 = vst.msk [vmem:[#allocation2 + $0xd8] sm:$0xff] %vm1017, %v980
    %1046 = vst.msk [vmem:[#allocation2 + $0xe0] sm:$0xff] %vm1017, %v981
    %1047 = vst.msk [vmem:[#allocation2 + $0xe8] sm:$0xff] %vm1017, %v982
    %1048 = vst.msk [vmem:[#allocation2 + $0xf0] sm:$0xff] %vm1017, %v983
    %1049 = vst.msk [vmem:[#allocation2 + $0xf8] sm:$0xff] %vm1017, %v984
    %1050 = vst.msk [vmem:[#allocation2 + $0x100] sm:$0xff] %vm1017, %v985
    %1051 = vst.msk [vmem:[#allocation2 + $0x108] sm:$0xff] %vm1017, %v986
    %1052 = vst.msk [vmem:[#allocation2 + $0x110] sm:$0xff] %vm1017, %v987
    %1053 = vst.msk [vmem:[#allocation2 + $0x118] sm:$0xff] %vm1017, %v988
    %1054 = vst.msk [vmem:[#allocation2 + $0x120] sm:$0xff] %vm1017, %v989
    %1055 = vst.msk [vmem:[#allocation2 + $0x128] sm:$0xff] %vm1017, %v990
    %1056 = vst.msk [vmem:[#allocation2 + $0x130] sm:$0xff] %vm1017, %v991
    %1057 = vst.msk [vmem:[#allocation2 + $0x138] sm:$0xff] %vm1017, %v992
    %1058 = vst.msk [vmem:[#allocation2 + $0x140] sm:$0xff] %vm1017, %v993
    %1059 = vst.msk [vmem:[#allocation2 + $0x148] sm:$0xff] %vm1017, %v994
    %1060 = vst.msk [vmem:[#allocation2 + $0x150] sm:$0xff] %vm1017, %v995
    %1061 = vst.msk [vmem:[#allocation2 + $0x158] sm:$0xff] %vm1017, %v996
    %1062 = vst.msk [vmem:[#allocation2 + $0x160] sm:$0xff] %vm1017, %v997
    %1063 = vst.msk [vmem:[#allocation2 + $0x168] sm:$0xff] %vm1017, %v998
    %1064 = vst.msk [vmem:[#allocation2 + $0x170] sm:$0xff] %vm1017, %v999
    %1065 = vst.msk [vmem:[#allocation2 + $0x178] sm:$0xff] %vm1017, %v1000
    %1066 = vst.msk [vmem:[#allocation2 + $0x180] sm:$0xff] %vm1017, %v1001
    %1067 = vst.msk [vmem:[#allocation2 + $0x188] sm:$0xff] %vm1017, %v1002
    %1068 = vst.msk [vmem:[#allocation2 + $0x190] sm:$0xff] %vm1017, %v1003
    %1069 = vst.msk [vmem:[#allocation2 + $0x198] sm:$0xff] %vm1017, %v1004
    %1070 = vst.msk [vmem:[#allocation2 + $0x1a0] sm:$0xff] %vm1017, %v1005
    %1071 = vst.msk [vmem:[#allocation2 + $0x1a8] sm:$0xff] %vm1017, %v1006
    %1072 = vst.msk [vmem:[#allocation2 + $0x1b0] sm:$0xff] %vm1017, %v1007
    %1073 = vst.msk [vmem:[#allocation2 + $0x1b8] sm:$0xff] %vm1017, %v1008
    %1074 = vst.msk [vmem:[#allocation2 + $0x1c0] sm:$0xff] %vm1017, %v1009
    %1075 = vst.msk [vmem:[#allocation2 + $0x1c8] sm:$0xff] %vm1017, %v1010
    %1076 = vst.msk [vmem:[#allocation2 + $0x1d0] sm:$0xff] %vm1017, %v1011
    %1077 = vst.msk [vmem:[#allocation2 + $0x1d8] sm:$0xff] %vm1017, %v1012
    %1078 = vst.msk [vmem:[#allocation2 + $0x1e0] sm:$0xff] %vm1017, %v1013
    %1079 = vst.msk [vmem:[#allocation2 + $0x1e8] sm:$0xff] %vm1017, %v1014
    %1080 = vst.msk [vmem:[#allocation2 + $0x1f0] sm:$0xff] %vm1017, %v1015
    %1081 = vst.msk [vmem:[#allocation2 + $0x1f8] sm:$0xff] %vm1017, %v1016
    // Predicated region
    $region22: #{conv_bn_act.1} parent=1 // pred_check
      %p1082 = pneg %p19
    $region23: #{conv_bn_act.1} parent=1 // pred_check_branch
      %1084 = sbr.rel (%p1082) target = $region25
    $region24: #{conv_bn_act.1} parent=1 // pred_region
      %v1085 = vld [vmem:[#allocation2] sm:$0xff]
      %v1086 = vld [vmem:[#allocation2 + $0x8] sm:$0xff]
      %v1087 = vld [vmem:[#allocation2 + $0x10] sm:$0xff]
      %v1088 = vld [vmem:[#allocation2 + $0x18] sm:$0xff]
      %v1089 = vld [vmem:[#allocation2 + $0x20] sm:$0xff]
      %v1090 = vld [vmem:[#allocation2 + $0x28] sm:$0xff]
      %v1091 = vld [vmem:[#allocation2 + $0x30] sm:$0xff]
      %v1092 = vld [vmem:[#allocation2 + $0x38] sm:$0xff]
      %v1093 = vld [vmem:[#allocation2 + $0x40] sm:$0xff]
      %v1094 = vld [vmem:[#allocation2 + $0x48] sm:$0xff]
      %v1095 = vld [vmem:[#allocation2 + $0x50] sm:$0xff]
      %v1096 = vld [vmem:[#allocation2 + $0x58] sm:$0xff]
      %v1097 = vld [vmem:[#allocation2 + $0x60] sm:$0xff]
      %v1098 = vld [vmem:[#allocation2 + $0x68] sm:$0xff]
      %v1099 = vld [vmem:[#allocation2 + $0x70] sm:$0xff]
      %v1100 = vld [vmem:[#allocation2 + $0x78] sm:$0xff]
      %v1101 = vld [vmem:[#allocation2 + $0x80] sm:$0xff]
      %v1102 = vld [vmem:[#allocation2 + $0x88] sm:$0xff]
      %v1103 = vld [vmem:[#allocation2 + $0x90] sm:$0xff]
      %v1104 = vld [vmem:[#allocation2 + $0x98] sm:$0xff]
      %v1105 = vld [vmem:[#allocation2 + $0xa0] sm:$0xff]
      %v1106 = vld [vmem:[#allocation2 + $0xa8] sm:$0xff]
      %v1107 = vld [vmem:[#allocation2 + $0xb0] sm:$0xff]
      %v1108 = vld [vmem:[#allocation2 + $0xb8] sm:$0xff]
      %v1109 = vld [vmem:[#allocation2 + $0xc0] sm:$0xff]
      %v1110 = vld [vmem:[#allocation2 + $0xc8] sm:$0xff]
      %v1111 = vld [vmem:[#allocation2 + $0xd0] sm:$0xff]
      %v1112 = vld [vmem:[#allocation2 + $0xd8] sm:$0xff]
      %v1113 = vld [vmem:[#allocation2 + $0xe0] sm:$0xff]
      %v1114 = vld [vmem:[#allocation2 + $0xe8] sm:$0xff]
      %v1115 = vld [vmem:[#allocation2 + $0xf0] sm:$0xff]
      %v1116 = vld [vmem:[#allocation2 + $0xf8] sm:$0xff]
      %v1117 = vld [vmem:[#allocation2 + $0x100] sm:$0xff]
      %v1118 = vld [vmem:[#allocation2 + $0x108] sm:$0xff]
      %v1119 = vld [vmem:[#allocation2 + $0x110] sm:$0xff]
      %v1120 = vld [vmem:[#allocation2 + $0x118] sm:$0xff]
      %v1121 = vld [vmem:[#allocation2 + $0x120] sm:$0xff]
      %v1122 = vld [vmem:[#allocation2 + $0x128] sm:$0xff]
      %v1123 = vld [vmem:[#allocation2 + $0x130] sm:$0xff]
      %v1124 = vld [vmem:[#allocation2 + $0x138] sm:$0xff]
      %v1125 = vld [vmem:[#allocation2 + $0x140] sm:$0xff]
      %v1126 = vld [vmem:[#allocation2 + $0x148] sm:$0xff]
      %v1127 = vld [vmem:[#allocation2 + $0x150] sm:$0xff]
      %v1128 = vld [vmem:[#allocation2 + $0x158] sm:$0xff]
      %v1129 = vld [vmem:[#allocation2 + $0x160] sm:$0xff]
      %v1130 = vld [vmem:[#allocation2 + $0x168] sm:$0xff]
      %v1131 = vld [vmem:[#allocation2 + $0x170] sm:$0xff]
      %v1132 = vld [vmem:[#allocation2 + $0x178] sm:$0xff]
      %v1133 = vld [vmem:[#allocation2 + $0x180] sm:$0xff]
      %v1134 = vld [vmem:[#allocation2 + $0x188] sm:$0xff]
      %v1135 = vld [vmem:[#allocation2 + $0x190] sm:$0xff]
      %v1136 = vld [vmem:[#allocation2 + $0x198] sm:$0xff]
      %v1137 = vld [vmem:[#allocation2 + $0x1a0] sm:$0xff]
      %v1138 = vld [vmem:[#allocation2 + $0x1a8] sm:$0xff]
      %v1139 = vld [vmem:[#allocation2 + $0x1b0] sm:$0xff]
      %v1140 = vld [vmem:[#allocation2 + $0x1b8] sm:$0xff]
      %v1141 = vld [vmem:[#allocation2 + $0x1c0] sm:$0xff]
      %v1142 = vld [vmem:[#allocation2 + $0x1c8] sm:$0xff]
      %v1143 = vld [vmem:[#allocation2 + $0x1d0] sm:$0xff]
      %v1144 = vld [vmem:[#allocation2 + $0x1d8] sm:$0xff]
      %v1145 = vld [vmem:[#allocation2 + $0x1e0] sm:$0xff]
      %v1146 = vld [vmem:[#allocation2 + $0x1e8] sm:$0xff]
      %v1147 = vld [vmem:[#allocation2 + $0x1f0] sm:$0xff]
      %v1148 = vld [vmem:[#allocation2 + $0x1f8] sm:$0xff]
      %v1149 = vld [vmem:[%s2] sm:$0x1]
      %v1151 = vlaneseq
      %v1152 = vshrl.u32 %v1151, 7
      %v1153 = vsub.s32 0, %v1152
      %v1154 = vrot.slane %v1149, %v1153
      %v1156 = vmul.f32 %v1085, %v1154
      %v1157 = vmul.f32 %v1086, %v1154
      %v1158 = vmul.f32 %v1087, %v1154
      %v1159 = vmul.f32 %v1088, %v1154
      %v1160 = vmul.f32 %v1089, %v1154
      %v1161 = vmul.f32 %v1090, %v1154
      %v1162 = vmul.f32 %v1091, %v1154
      %v1163 = vmul.f32 %v1092, %v1154
      %v1164 = vmul.f32 %v1093, %v1154
      %v1165 = vmul.f32 %v1094, %v1154
      %v1166 = vmul.f32 %v1095, %v1154
      %v1167 = vmul.f32 %v1096, %v1154
      %v1168 = vmul.f32 %v1097, %v1154
      %v1169 = vmul.f32 %v1098, %v1154
      %v1170 = vmul.f32 %v1099, %v1154
      %v1171 = vmul.f32 %v1100, %v1154
      %v1172 = vmul.f32 %v1101, %v1154
      %v1173 = vmul.f32 %v1102, %v1154
      %v1174 = vmul.f32 %v1103, %v1154
      %v1175 = vmul.f32 %v1104, %v1154
      %v1176 = vmul.f32 %v1105, %v1154
      %v1177 = vmul.f32 %v1106, %v1154
      %v1178 = vmul.f32 %v1107, %v1154
      %v1179 = vmul.f32 %v1108, %v1154
      %v1180 = vmul.f32 %v1109, %v1154
      %v1181 = vmul.f32 %v1110, %v1154
      %v1182 = vmul.f32 %v1111, %v1154
      %v1183 = vmul.f32 %v1112, %v1154
      %v1184 = vmul.f32 %v1113, %v1154
      %v1185 = vmul.f32 %v1114, %v1154
      %v1186 = vmul.f32 %v1115, %v1154
      %v1187 = vmul.f32 %v1116, %v1154
      %v1188 = vmul.f32 %v1117, %v1154
      %v1189 = vmul.f32 %v1118, %v1154
      %v1190 = vmul.f32 %v1119, %v1154
      %v1191 = vmul.f32 %v1120, %v1154
      %v1192 = vmul.f32 %v1121, %v1154
      %v1193 = vmul.f32 %v1122, %v1154
      %v1194 = vmul.f32 %v1123, %v1154
      %v1195 = vmul.f32 %v1124, %v1154
      %v1196 = vmul.f32 %v1125, %v1154
      %v1197 = vmul.f32 %v1126, %v1154
      %v1198 = vmul.f32 %v1127, %v1154
      %v1199 = vmul.f32 %v1128, %v1154
      %v1200 = vmul.f32 %v1129, %v1154
      %v1201 = vmul.f32 %v1130, %v1154
      %v1202 = vmul.f32 %v1131, %v1154
      %v1203 = vmul.f32 %v1132, %v1154
      %v1204 = vmul.f32 %v1133, %v1154
      %v1205 = vmul.f32 %v1134, %v1154
      %v1206 = vmul.f32 %v1135, %v1154
      %v1207 = vmul.f32 %v1136, %v1154
      %v1208 = vmul.f32 %v1137, %v1154
      %v1209 = vmul.f32 %v1138, %v1154
      %v1210 = vmul.f32 %v1139, %v1154
      %v1211 = vmul.f32 %v1140, %v1154
      %v1212 = vmul.f32 %v1141, %v1154
      %v1213 = vmul.f32 %v1142, %v1154
      %v1214 = vmul.f32 %v1143, %v1154
      %v1215 = vmul.f32 %v1144, %v1154
      %v1216 = vmul.f32 %v1145, %v1154
      %v1217 = vmul.f32 %v1146, %v1154
      %v1218 = vmul.f32 %v1147, %v1154
      %v1219 = vmul.f32 %v1148, %v1154
      %v1220 = vld [vmem:[%s3] sm:$0x1]
      %v1222 = vlaneseq
      %v1223 = vshrl.u32 %v1222, 7
      %v1224 = vsub.s32 0, %v1223
      %v1225 = vrot.slane %v1220, %v1224
      %v1227 = vadd.f32 %v1156, %v1225
      %v1228 = vadd.f32 %v1157, %v1225
      %v1229 = vadd.f32 %v1158, %v1225
      %v1230 = vadd.f32 %v1159, %v1225
      %v1231 = vadd.f32 %v1160, %v1225
      %v1232 = vadd.f32 %v1161, %v1225
      %v1233 = vadd.f32 %v1162, %v1225
      %v1234 = vadd.f32 %v1163, %v1225
      %v1235 = vadd.f32 %v1164, %v1225
      %v1236 = vadd.f32 %v1165, %v1225
      %v1237 = vadd.f32 %v1166, %v1225
      %v1238 = vadd.f32 %v1167, %v1225
      %v1239 = vadd.f32 %v1168, %v1225
      %v1240 = vadd.f32 %v1169, %v1225
      %v1241 = vadd.f32 %v1170, %v1225
      %v1242 = vadd.f32 %v1171, %v1225
      %v1243 = vadd.f32 %v1172, %v1225
      %v1244 = vadd.f32 %v1173, %v1225
      %v1245 = vadd.f32 %v1174, %v1225
      %v1246 = vadd.f32 %v1175, %v1225
      %v1247 = vadd.f32 %v1176, %v1225
      %v1248 = vadd.f32 %v1177, %v1225
      %v1249 = vadd.f32 %v1178, %v1225
      %v1250 = vadd.f32 %v1179, %v1225
      %v1251 = vadd.f32 %v1180, %v1225
      %v1252 = vadd.f32 %v1181, %v1225
      %v1253 = vadd.f32 %v1182, %v1225
      %v1254 = vadd.f32 %v1183, %v1225
      %v1255 = vadd.f32 %v1184, %v1225
      %v1256 = vadd.f32 %v1185, %v1225
      %v1257 = vadd.f32 %v1186, %v1225
      %v1258 = vadd.f32 %v1187, %v1225
      %v1259 = vadd.f32 %v1188, %v1225
      %v1260 = vadd.f32 %v1189, %v1225
      %v1261 = vadd.f32 %v1190, %v1225
      %v1262 = vadd.f32 %v1191, %v1225
      %v1263 = vadd.f32 %v1192, %v1225
      %v1264 = vadd.f32 %v1193, %v1225
      %v1265 = vadd.f32 %v1194, %v1225
      %v1266 = vadd.f32 %v1195, %v1225
      %v1267 = vadd.f32 %v1196, %v1225
      %v1268 = vadd.f32 %v1197, %v1225
      %v1269 = vadd.f32 %v1198, %v1225
      %v1270 = vadd.f32 %v1199, %v1225
      %v1271 = vadd.f32 %v1200, %v1225
      %v1272 = vadd.f32 %v1201, %v1225
      %v1273 = vadd.f32 %v1202, %v1225
      %v1274 = vadd.f32 %v1203, %v1225
      %v1275 = vadd.f32 %v1204, %v1225
      %v1276 = vadd.f32 %v1205, %v1225
      %v1277 = vadd.f32 %v1206, %v1225
      %v1278 = vadd.f32 %v1207, %v1225
      %v1279 = vadd.f32 %v1208, %v1225
      %v1280 = vadd.f32 %v1209, %v1225
      %v1281 = vadd.f32 %v1210, %v1225
      %v1282 = vadd.f32 %v1211, %v1225
      %v1283 = vadd.f32 %v1212, %v1225
      %v1284 = vadd.f32 %v1213, %v1225
      %v1285 = vadd.f32 %v1214, %v1225
      %v1286 = vadd.f32 %v1215, %v1225
      %v1287 = vadd.f32 %v1216, %v1225
      %v1288 = vadd.f32 %v1217, %v1225
      %v1289 = vadd.f32 %v1218, %v1225
      %v1290 = vadd.f32 %v1219, %v1225
      %v1291 = vmax.f32 %v1227, 0.0
      %v1292 = vmax.f32 %v1228, 0.0
      %v1293 = vmax.f32 %v1229, 0.0
      %v1294 = vmax.f32 %v1230, 0.0
      %v1295 = vmax.f32 %v1231, 0.0
      %v1296 = vmax.f32 %v1232, 0.0
      %v1297 = vmax.f32 %v1233, 0.0
      %v1298 = vmax.f32 %v1234, 0.0
      %v1299 = vmax.f32 %v1235, 0.0
      %v1300 = vmax.f32 %v1236, 0.0
      %v1301 = vmax.f32 %v1237, 0.0
      %v1302 = vmax.f32 %v1238, 0.0
      %v1303 = vmax.f32 %v1239, 0.0
      %v1304 = vmax.f32 %v1240, 0.0
      %v1305 = vmax.f32 %v1241, 0.0
      %v1306 = vmax.f32 %v1242, 0.0
      %v1307 = vmax.f32 %v1243, 0.0
      %v1308 = vmax.f32 %v1244, 0.0
      %v1309 = vmax.f32 %v1245, 0.0
      %v1310 = vmax.f32 %v1246, 0.0
      %v1311 = vmax.f32 %v1247, 0.0
      %v1312 = vmax.f32 %v1248, 0.0
      %v1313 = vmax.f32 %v1249, 0.0
      %v1314 = vmax.f32 %v1250, 0.0
      %v1315 = vmax.f32 %v1251, 0.0
      %v1316 = vmax.f32 %v1252, 0.0
      %v1317 = vmax.f32 %v1253, 0.0
      %v1318 = vmax.f32 %v1254, 0.0
      %v1319 = vmax.f32 %v1255, 0.0
      %v1320 = vmax.f32 %v1256, 0.0
      %v1321 = vmax.f32 %v1257, 0.0
      %v1322 = vmax.f32 %v1258, 0.0
      %v1323 = vmax.f32 %v1259, 0.0
      %v1324 = vmax.f32 %v1260, 0.0
      %v1325 = vmax.f32 %v1261, 0.0
      %v1326 = vmax.f32 %v1262, 0.0
      %v1327 = vmax.f32 %v1263, 0.0
      %v1328 = vmax.f32 %v1264, 0.0
      %v1329 = vmax.f32 %v1265, 0.0
      %v1330 = vmax.f32 %v1266, 0.0
      %v1331 = vmax.f32 %v1267, 0.0
      %v1332 = vmax.f32 %v1268, 0.0
      %v1333 = vmax.f32 %v1269, 0.0
      %v1334 = vmax.f32 %v1270, 0.0
      %v1335 = vmax.f32 %v1271, 0.0
      %v1336 = vmax.f32 %v1272, 0.0
      %v1337 = vmax.f32 %v1273, 0.0
      %v1338 = vmax.f32 %v1274, 0.0
      %v1339 = vmax.f32 %v1275, 0.0
      %v1340 = vmax.f32 %v1276, 0.0
      %v1341 = vmax.f32 %v1277, 0.0
      %v1342 = vmax.f32 %v1278, 0.0
      %v1343 = vmax.f32 %v1279, 0.0
      %v1344 = vmax.f32 %v1280, 0.0
      %v1345 = vmax.f32 %v1281, 0.0
      %v1346 = vmax.f32 %v1282, 0.0
      %v1347 = vmax.f32 %v1283, 0.0
      %v1348 = vmax.f32 %v1284, 0.0
      %v1349 = vmax.f32 %v1285, 0.0
      %v1350 = vmax.f32 %v1286, 0.0
      %v1351 = vmax.f32 %v1287, 0.0
      %v1352 = vmax.f32 %v1288, 0.0
      %v1353 = vmax.f32 %v1289, 0.0
      %v1354 = vmax.f32 %v1290, 0.0
      %v1355 = vpack.c.bf16 %v1292, %v1291
      %v1356 = vpack.c.bf16 %v1294, %v1293
      %v1357 = vpack.c.bf16 %v1296, %v1295
      %v1358 = vpack.c.bf16 %v1298, %v1297
      %v1359 = vpack.c.bf16 %v1300, %v1299
      %v1360 = vpack.c.bf16 %v1302, %v1301
      %v1361 = vpack.c.bf16 %v1304, %v1303
      %v1362 = vpack.c.bf16 %v1306, %v1305
      %v1363 = vpack.c.bf16 %v1308, %v1307
      %v1364 = vpack.c.bf16 %v1310, %v1309
      %v1365 = vpack.c.bf16 %v1312, %v1311
      %v1366 = vpack.c.bf16 %v1314, %v1313
      %v1367 = vpack.c.bf16 %v1316, %v1315
      %v1368 = vpack.c.bf16 %v1318, %v1317
      %v1369 = vpack.c.bf16 %v1320, %v1319
      %v1370 = vpack.c.bf16 %v1322, %v1321
      %v1371 = vpack.c.bf16 %v1324, %v1323
      %v1372 = vpack.c.bf16 %v1326, %v1325
      %v1373 = vpack.c.bf16 %v1328, %v1327
      %v1374 = vpack.c.bf16 %v1330, %v1329
      %v1375 = vpack.c.bf16 %v1332, %v1331
      %v1376 = vpack.c.bf16 %v1334, %v1333
      %v1377 = vpack.c.bf16 %v1336, %v1335
      %v1378 = vpack.c.bf16 %v1338, %v1337
      %v1379 = vpack.c.bf16 %v1340, %v1339
      %v1380 = vpack.c.bf16 %v1342, %v1341
      %v1381 = vpack.c.bf16 %v1344, %v1343
      %v1382 = vpack.c.bf16 %v1346, %v1345
      %v1383 = vpack.c.bf16 %v1348, %v1347
      %v1384 = vpack.c.bf16 %v1350, %v1349
      %v1385 = vpack.c.bf16 %v1352, %v1351
      %v1386 = vpack.c.bf16 %v1354, %v1353
      %v1419 = vunpack.c.l.b16 %v1355
      %v1420 = vunpack.c.h.b16 %v1355
      %v1421 = vunpack.c.l.b16 %v1356
      %v1422 = vunpack.c.h.b16 %v1356
      %v1423 = vunpack.c.l.b16 %v1357
      %v1424 = vunpack.c.h.b16 %v1357
      %v1425 = vunpack.c.l.b16 %v1358
      %v1426 = vunpack.c.h.b16 %v1358
      %v1427 = vunpack.c.l.b16 %v1359
      %v1428 = vunpack.c.h.b16 %v1359
      %v1429 = vunpack.c.l.b16 %v1360
      %v1430 = vunpack.c.h.b16 %v1360
      %v1431 = vunpack.c.l.b16 %v1361
      %v1432 = vunpack.c.h.b16 %v1361
      %v1433 = vunpack.c.l.b16 %v1362
      %v1434 = vunpack.c.h.b16 %v1362
      %v1435 = vunpack.c.l.b16 %v1363
      %v1436 = vunpack.c.h.b16 %v1363
      %v1437 = vunpack.c.l.b16 %v1364
      %v1438 = vunpack.c.h.b16 %v1364
      %v1439 = vunpack.c.l.b16 %v1365
      %v1440 = vunpack.c.h.b16 %v1365
      %v1441 = vunpack.c.l.b16 %v1366
      %v1442 = vunpack.c.h.b16 %v1366
      %v1443 = vunpack.c.l.b16 %v1367
      %v1444 = vunpack.c.h.b16 %v1367
      %v1445 = vunpack.c.l.b16 %v1368
      %v1446 = vunpack.c.h.b16 %v1368
      %v1447 = vunpack.c.l.b16 %v1369
      %v1448 = vunpack.c.h.b16 %v1369
      %v1449 = vunpack.c.l.b16 %v1370
      %v1450 = vunpack.c.h.b16 %v1370
      %v1451 = vunpack.c.l.b16 %v1371
      %v1452 = vunpack.c.h.b16 %v1371
      %v1453 = vunpack.c.l.b16 %v1372
      %v1454 = vunpack.c.h.b16 %v1372
      %v1455 = vunpack.c.l.b16 %v1373
      %v1456 = vunpack.c.h.b16 %v1373
      %v1457 = vunpack.c.l.b16 %v1374
      %v1458 = vunpack.c.h.b16 %v1374
      %v1459 = vunpack.c.l.b16 %v1375
      %v1460 = vunpack.c.h.b16 %v1375
      %v1461 = vunpack.c.l.b16 %v1376
      %v1462 = vunpack.c.h.b16 %v1376
      %v1463 = vunpack.c.l.b16 %v1377
      %v1464 = vunpack.c.h.b16 %v1377
      %v1465 = vunpack.c.l.b16 %v1378
      %v1466 = vunpack.c.h.b16 %v1378
      %v1467 = vunpack.c.l.b16 %v1379
      %v1468 = vunpack.c.h.b16 %v1379
      %v1469 = vunpack.c.l.b16 %v1380
      %v1470 = vunpack.c.h.b16 %v1380
      %v1471 = vunpack.c.l.b16 %v1381
      %v1472 = vunpack.c.h.b16 %v1381
      %v1473 = vunpack.c.l.b16 %v1382
      %v1474 = vunpack.c.h.b16 %v1382
      %v1475 = vunpack.c.l.b16 %v1383
      %v1476 = vunpack.c.h.b16 %v1383
      %v1477 = vunpack.c.l.b16 %v1384
      %v1478 = vunpack.c.h.b16 %v1384
      %v1479 = vunpack.c.l.b16 %v1385
      %v1480 = vunpack.c.h.b16 %v1385
      %v1481 = vunpack.c.l.b16 %v1386
      %v1482 = vunpack.c.h.b16 %v1386
      %v1483 = vpack.c.b16 %v1419, %v1419
      %v1484 = vpack.c.b16 %v1420, %v1420
      %v1485 = vpack.c.b16 %v1421, %v1421
      %v1486 = vpack.c.b16 %v1422, %v1422
      %v1487 = vpack.c.b16 %v1423, %v1423
      %v1488 = vpack.c.b16 %v1424, %v1424
      %v1489 = vpack.c.b16 %v1425, %v1425
      %v1490 = vpack.c.b16 %v1426, %v1426
      %v1491 = vpack.c.b16 %v1427, %v1427
      %v1492 = vpack.c.b16 %v1428, %v1428
      %v1493 = vpack.c.b16 %v1429, %v1429
      %v1494 = vpack.c.b16 %v1430, %v1430
      %v1495 = vpack.c.b16 %v1431, %v1431
      %v1496 = vpack.c.b16 %v1432, %v1432
      %v1497 = vpack.c.b16 %v1433, %v1433
      %v1498 = vpack.c.b16 %v1434, %v1434
      %v1499 = vpack.c.b16 %v1435, %v1435
      %v1500 = vpack.c.b16 %v1436, %v1436
      %v1501 = vpack.c.b16 %v1437, %v1437
      %v1502 = vpack.c.b16 %v1438, %v1438
      %v1503 = vpack.c.b16 %v1439, %v1439
      %v1504 = vpack.c.b16 %v1440, %v1440
      %v1505 = vpack.c.b16 %v1441, %v1441
      %v1506 = vpack.c.b16 %v1442, %v1442
      %v1507 = vpack.c.b16 %v1443, %v1443
      %v1508 = vpack.c.b16 %v1444, %v1444
      %v1509 = vpack.c.b16 %v1445, %v1445
      %v1510 = vpack.c.b16 %v1446, %v1446
      %v1511 = vpack.c.b16 %v1447, %v1447
      %v1512 = vpack.c.b16 %v1448, %v1448
      %v1513 = vpack.c.b16 %v1449, %v1449
      %v1514 = vpack.c.b16 %v1450, %v1450
      %v1515 = vpack.c.b16 %v1451, %v1451
      %v1516 = vpack.c.b16 %v1452, %v1452
      %v1517 = vpack.c.b16 %v1453, %v1453
      %v1518 = vpack.c.b16 %v1454, %v1454
      %v1519 = vpack.c.b16 %v1455, %v1455
      %v1520 = vpack.c.b16 %v1456, %v1456
      %v1521 = vpack.c.b16 %v1457, %v1457
      %v1522 = vpack.c.b16 %v1458, %v1458
      %v1523 = vpack.c.b16 %v1459, %v1459
      %v1524 = vpack.c.b16 %v1460, %v1460
      %v1525 = vpack.c.b16 %v1461, %v1461
      %v1526 = vpack.c.b16 %v1462, %v1462
      %v1527 = vpack.c.b16 %v1463, %v1463
      %v1528 = vpack.c.b16 %v1464, %v1464
      %v1529 = vpack.c.b16 %v1465, %v1465
      %v1530 = vpack.c.b16 %v1466, %v1466
      %v1531 = vpack.c.b16 %v1467, %v1467
      %v1532 = vpack.c.b16 %v1468, %v1468
      %v1533 = vpack.c.b16 %v1469, %v1469
      %v1534 = vpack.c.b16 %v1470, %v1470
      %v1535 = vpack.c.b16 %v1471, %v1471
      %v1536 = vpack.c.b16 %v1472, %v1472
      %v1537 = vpack.c.b16 %v1473, %v1473
      %v1538 = vpack.c.b16 %v1474, %v1474
      %v1539 = vpack.c.b16 %v1475, %v1475
      %v1540 = vpack.c.b16 %v1476, %v1476
      %v1541 = vpack.c.b16 %v1477, %v1477
      %v1542 = vpack.c.b16 %v1478, %v1478
      %v1543 = vpack.c.b16 %v1479, %v1479
      %v1544 = vpack.c.b16 %v1480, %v1480
      %v1545 = vpack.c.b16 %v1481, %v1481
      %v1546 = vpack.c.b16 %v1482, %v1482
      %vm1611 = vcmask 519168
      %1612 = vst.msk [vmem:[#allocation3] sm:$0xf] %vm1611, %v1483
      %1613 = vst.msk [vmem:[#allocation3 + $0x4] sm:$0xf] %vm1611, %v1484
      %1614 = vst.msk [vmem:[#allocation3 + $0x8] sm:$0xf] %vm1611, %v1485
      %1615 = vst.msk [vmem:[#allocation3 + $0xc] sm:$0xf] %vm1611, %v1486
      %1616 = vst.msk [vmem:[#allocation3 + $0x10] sm:$0xf] %vm1611, %v1487
      %1617 = vst.msk [vmem:[#allocation3 + $0x14] sm:$0xf] %vm1611, %v1488
      %1618 = vst.msk [vmem:[#allocation3 + $0x18] sm:$0xf] %vm1611, %v1489
      %1619 = vst.msk [vmem:[#allocation3 + $0x1c] sm:$0xf] %vm1611, %v1490
      %1620 = vst.msk [vmem:[#allocation3 + $0x20] sm:$0xf] %vm1611, %v1491
      %1621 = vst.msk [vmem:[#allocation3 + $0x24] sm:$0xf] %vm1611, %v1492
      %1622 = vst.msk [vmem:[#allocation3 + $0x28] sm:$0xf] %vm1611, %v1493
      %1623 = vst.msk [vmem:[#allocation3 + $0x2c] sm:$0xf] %vm1611, %v1494
      %1624 = vst.msk [vmem:[#allocation3 + $0x30] sm:$0xf] %vm1611, %v1495
      %1625 = vst.msk [vmem:[#allocation3 + $0x34] sm:$0xf] %vm1611, %v1496
      %1626 = vst.msk [vmem:[#allocation3 + $0x38] sm:$0xf] %vm1611, %v1497
      %1627 = vst.msk [vmem:[#allocation3 + $0x3c] sm:$0xf] %vm1611, %v1498
      %1628 = vst.msk [vmem:[#allocation3 + $0x40] sm:$0xf] %vm1611, %v1499
      %1629 = vst.msk [vmem:[#allocation3 + $0x44] sm:$0xf] %vm1611, %v1500
      %1630 = vst.msk [vmem:[#allocation3 + $0x48] sm:$0xf] %vm1611, %v1501
      %1631 = vst.msk [vmem:[#allocation3 + $0x4c] sm:$0xf] %vm1611, %v1502
      %1632 = vst.msk [vmem:[#allocation3 + $0x50] sm:$0xf] %vm1611, %v1503
      %1633 = vst.msk [vmem:[#allocation3 + $0x54] sm:$0xf] %vm1611, %v1504
      %1634 = vst.msk [vmem:[#allocation3 + $0x58] sm:$0xf] %vm1611, %v1505
      %1635 = vst.msk [vmem:[#allocation3 + $0x5c] sm:$0xf] %vm1611, %v1506
      %1636 = vst.msk [vmem:[#allocation3 + $0x60] sm:$0xf] %vm1611, %v1507
      %1637 = vst.msk [vmem:[#allocation3 + $0x64] sm:$0xf] %vm1611, %v1508
      %1638 = vst.msk [vmem:[#allocation3 + $0x68] sm:$0xf] %vm1611, %v1509
      %1639 = vst.msk [vmem:[#allocation3 + $0x6c] sm:$0xf] %vm1611, %v1510
      %1640 = vst.msk [vmem:[#allocation3 + $0x70] sm:$0xf] %vm1611, %v1511
      %1641 = vst.msk [vmem:[#allocation3 + $0x74] sm:$0xf] %vm1611, %v1512
      %1642 = vst.msk [vmem:[#allocation3 + $0x78] sm:$0xf] %vm1611, %v1513
      %1643 = vst.msk [vmem:[#allocation3 + $0x7c] sm:$0xf] %vm1611, %v1514
      %1644 = vst.msk [vmem:[#allocation3 + $0x80] sm:$0xf] %vm1611, %v1515
      %1645 = vst.msk [vmem:[#allocation3 + $0x84] sm:$0xf] %vm1611, %v1516
      %1646 = vst.msk [vmem:[#allocation3 + $0x88] sm:$0xf] %vm1611, %v1517
      %1647 = vst.msk [vmem:[#allocation3 + $0x8c] sm:$0xf] %vm1611, %v1518
      %1648 = vst.msk [vmem:[#allocation3 + $0x90] sm:$0xf] %vm1611, %v1519
      %1649 = vst.msk [vmem:[#allocation3 + $0x94] sm:$0xf] %vm1611, %v1520
      %1650 = vst.msk [vmem:[#allocation3 + $0x98] sm:$0xf] %vm1611, %v1521
      %1651 = vst.msk [vmem:[#allocation3 + $0x9c] sm:$0xf] %vm1611, %v1522
      %1652 = vst.msk [vmem:[#allocation3 + $0xa0] sm:$0xf] %vm1611, %v1523
      %1653 = vst.msk [vmem:[#allocation3 + $0xa4] sm:$0xf] %vm1611, %v1524
      %1654 = vst.msk [vmem:[#allocation3 + $0xa8] sm:$0xf] %vm1611, %v1525
      %1655 = vst.msk [vmem:[#allocation3 + $0xac] sm:$0xf] %vm1611, %v1526
      %1656 = vst.msk [vmem:[#allocation3 + $0xb0] sm:$0xf] %vm1611, %v1527
      %1657 = vst.msk [vmem:[#allocation3 + $0xb4] sm:$0xf] %vm1611, %v1528
      %1658 = vst.msk [vmem:[#allocation3 + $0xb8] sm:$0xf] %vm1611, %v1529
      %1659 = vst.msk [vmem:[#allocation3 + $0xbc] sm:$0xf] %vm1611, %v1530
      %1660 = vst.msk [vmem:[#allocation3 + $0xc0] sm:$0xf] %vm1611, %v1531
      %1661 = vst.msk [vmem:[#allocation3 + $0xc4] sm:$0xf] %vm1611, %v1532
      %1662 = vst.msk [vmem:[#allocation3 + $0xc8] sm:$0xf] %vm1611, %v1533
      %1663 = vst.msk [vmem:[#allocation3 + $0xcc] sm:$0xf] %vm1611, %v1534
      %1664 = vst.msk [vmem:[#allocation3 + $0xd0] sm:$0xf] %vm1611, %v1535
      %1665 = vst.msk [vmem:[#allocation3 + $0xd4] sm:$0xf] %vm1611, %v1536
      %1666 = vst.msk [vmem:[#allocation3 + $0xd8] sm:$0xf] %vm1611, %v1537
      %1667 = vst.msk [vmem:[#allocation3 + $0xdc] sm:$0xf] %vm1611, %v1538
      %1668 = vst.msk [vmem:[#allocation3 + $0xe0] sm:$0xf] %vm1611, %v1539
      %1669 = vst.msk [vmem:[#allocation3 + $0xe4] sm:$0xf] %vm1611, %v1540
      %1670 = vst.msk [vmem:[#allocation3 + $0xe8] sm:$0xf] %vm1611, %v1541
      %1671 = vst.msk [vmem:[#allocation3 + $0xec] sm:$0xf] %vm1611, %v1542
      %1672 = vst.msk [vmem:[#allocation3 + $0xf0] sm:$0xf] %vm1611, %v1543
      %1673 = vst.msk [vmem:[#allocation3 + $0xf4] sm:$0xf] %vm1611, %v1544
      %1674 = vst.msk [vmem:[#allocation3 + $0xf8] sm:$0xf] %vm1611, %v1545
      %1675 = vst.msk [vmem:[#allocation3 + $0xfc] sm:$0xf] %vm1611, %v1546
    $region25: #{conv_bn_act.1} parent=1 // pred_fallthru
      _
    // Predicated region
    $region26: #{conv_bn_act.1} parent=1 // pred_check
      _
    $region27: #{conv_bn_act.1} parent=1 // pred_check_branch
      %1677 = sbr.rel (0) target = $region29
    $region28: #{conv_bn_act.1} parent=1 // pred_region
      %s1679 = ssub.s32 4096, 4096
      %1680 = vsyncadd [#allocation4], %s1679
      %s1681 = sshll.u32 [#allocation3], 4
      %s1682 = int_to_ptr.vmem [resolvable:$true] %s1681
      %1687 = dma.vmem_to_hbm [thread:$0]  %s1682, 4096, %s4, [#allocation4], 64, 64, 4
    $region29: #{conv_bn_act.1} parent=1 // pred_fallthru
      _
    // Predicated region
    $region30: #{conv_bn_act.1} parent=1 // pred_check
      _
    $region31: #{conv_bn_act.1} parent=1 // pred_check_branch
      %1689 = sbr.rel (0) target = $region33
    $region32: #{conv_bn_act.1} parent=1 // pred_region
      %1690 = dma.done [#allocation4], 4096
    $region33: #{conv_bn_act.1} parent=1 // pred_fallthru
      _
    %1691 = vsyncpa [#allocation4], 1

</llo_original>
